<compile_context>
chip_gen: v7x
topology: tpu7x:2x2x1
jax: 0.10.0
libtpu: 0.0.40
codegen_flags: <defaults>
</compile_context>

<pallas_src>
import functools

import jax
import jax.numpy as jnp
from jax.experimental import pallas as pl
from jax.experimental.pallas import tpu as pltpu

HIDDEN = 32
LATENT = 32
COORDS_RANGE = 10.0   # tanh=True scaling in standard EGNN implementations
TILE_E = 512          # edges per grid step (multiple of 128); shrink for v7x + huge N_pad
NUM_SPLITS = 2        # leading "parallel" axis -> both TensorCores on v7x
C_PAD = 8             # xyz axis padded to one full sublane group


def _round_up(x, m):
    return ((x + m - 1) // m) * m


# ----------------------------------------------------------------------------
# Fused Pallas kernel: grid (split, edge-tile); accumulator resident per split.
# ----------------------------------------------------------------------------
def _decoder_kernel(
    edges_ref,    # (2, TILE_E)        int32  [row; col], edges on lanes
    stacked_ref,  # (H+C_PAD, N_pad)   bf16   [h ; pos] stacked on sublanes
    w_ref,        # (4, H, H)          f32    [we1_src, we1_dst, we2, wc1]
    col_ref,      # (H, 8)             f32    cols: we1r, be1, be2, bc1, wc2, bc2
    out_ref,      # (C_PAD, N_pad)     f32    per-split accumulated displacement
):
    step = pl.program_id(1)
    n_pad = out_ref.shape[1]
    h = w_ref.shape[1]

    @pl.when(step == 0)
    def _init():
        out_ref[...] = jnp.zeros_like(out_ref)

    row = edges_ref[0:1, :]   # (1, tile_E)
    col = edges_ref[1:2, :]   # (1, tile_E)

    # Thin iota column; one-hots built by broadcasted compare (0/1 exact in bf16).
    # Padded edges carry the sentinel index n_pad, which matches no node -> zero columns.
    node_ids = jax.lax.broadcasted_iota(jnp.int32, (n_pad, 1), 0)
    oh_src = (node_ids == row).astype(jnp.bfloat16)   # (N_pad, tile_E)
    oh_dst = (node_ids == col).astype(jnp.bfloat16)

    # Single fused gather of h and pos for source and destination nodes.
    stacked = stacked_ref[...]                                              # (H+C_PAD, N_pad)
    g_src = jnp.dot(stacked, oh_src, preferred_element_type=jnp.float32)    # (H+C_PAD, tile_E)
    g_dst = jnp.dot(stacked, oh_dst, preferred_element_type=jnp.float32)

    h_src = g_src[:h]
    h_dst = g_dst[:h]
    cd = g_src[h:] - g_dst[h:]                                              # (C_PAD, tile_E)
    radial = jnp.sum(cd * cd, axis=0, keepdims=True)                        # (1, tile_E)
    cd = cd * pl.reciprocal(jnp.sqrt(radial) + 1e-8, approx=True)

    cols = col_ref[...]                     # (H, 8) f32, loaded once per tile
    we1r = cols[:, 0:1]
    be1 = cols[:, 1:2]
    be2 = cols[:, 2:3]
    bc1 = cols[:, 3:4]
    wc2 = cols[:, 4:5]
    bc2 = cols[0:1, 5:6]

    # ---- edge MLP: Linear -> SiLU -> Linear -> SiLU (we1 split, no concat) ----
    m = (
        jnp.dot(w_ref[0], h_src, preferred_element_type=jnp.float32)
        + jnp.dot(w_ref[1], h_dst, preferred_element_type=jnp.float32)
        + we1r * radial
        + be1
    )
    m = jax.nn.silu(m)
    m = jax.nn.silu(
        jnp.dot(w_ref[2], m, preferred_element_type=jnp.float32) + be2
    )

    # ---- coord MLP: Linear -> SiLU -> Linear -> tanh * coords_range ----
    t = jax.nn.silu(
        jnp.dot(w_ref[3], m, preferred_element_type=jnp.float32) + bc1
    )
    t = jnp.tanh(jnp.sum(wc2 * t, axis=0, keepdims=True) + bc2) * COORDS_RANGE  # (1, tile_E)

    trans = (cd * t).astype(jnp.bfloat16)                                   # (C_PAD, tile_E)

    # ---- scatter-add to source nodes: trans @ oh_src^T (reuses the gather one-hot) ----
    out_ref[...] += jax.lax.dot_general(
        trans, oh_src,
        dimension_numbers=(((1,), (1,)), ((), ())),
        preferred_element_type=jnp.float32,
    )


# ----------------------------------------------------------------------------
# Decoder forward: node-sized glue in JAX, everything edge-sized in the kernel.
# ----------------------------------------------------------------------------
@functools.partial(jax.jit, static_argnames=("num_nodes",))
def decoder_forward(x, z, pos, edge_index, batch, num_nodes, params, l_uc):
    n = num_nodes
    e_num = edge_index.shape[1]
    n_pad = _round_up(max(n, 1), 128)                     # lane-dense node axis
    e_pad = _round_up(max(e_num, 1), NUM_SPLITS * TILE_E)
    h = HIDDEN

    # ---- node-sized glue (tiny, XLA): z gather, concat, embedding Linear ----
    z_nodes = jnp.take(z, batch, axis=0)                                   # (N, L)
    inp = jnp.concatenate([x.reshape(n, 1), z_nodes], axis=-1)             # (N, L+1)
    h_nodes = (inp @ params["emb_w"] + params["emb_b"]).astype(jnp.float32)  # (N, H)

    # stacked gather operand: [h ; pos] transposed, nodes on lanes, bf16
    h_pad = jnp.pad(h_nodes, ((0, n_pad - n), (0, 0)))
    pos_pad = jnp.pad(pos.astype(jnp.float32), ((0, n_pad - n), (0, C_PAD - 3)))
    stacked = jnp.concatenate([h_pad, pos_pad], axis=-1).T.astype(jnp.bfloat16)  # (H+C_PAD, N_pad)

    # edge indices, edges on lanes; padded edges get sentinel index n_pad
    row = edge_index[0].astype(jnp.int32)
    col = edge_index[1].astype(jnp.int32)
    pad_e = e_pad - e_num
    edges_lane = jnp.stack(
        [jnp.pad(row, (0, pad_e), constant_values=n_pad),
         jnp.pad(col, (0, pad_e), constant_values=n_pad)], axis=0)          # (2, E_pad)

    # ---- weight packing: one (4,H,H) slab + one (H,8) column slab ----
    we1 = params["we1"]                                                     # (2H+1, H)
    w_slab = jnp.stack(
        [we1[:h].T, we1[h:2 * h].T, params["we2"].T, params["wc1"].T],
        axis=0).astype(jnp.float32)                                         # (4, H, H)
    col_slab = jnp.zeros((h, 8), jnp.float32)
    col_slab = col_slab.at[:, 0].set(we1[2 * h])                            # we1r
    col_slab = col_slab.at[:, 1].set(params["be1"])
    col_slab = col_slab.at[:, 2].set(params["be2"])
    col_slab = col_slab.at[:, 3].set(params["bc1"])
    col_slab = col_slab.at[:, 4].set(params["wc2"].reshape(h))
    col_slab = col_slab.at[0, 5].set(params["bc2"][0])

    num_tiles = e_pad // (NUM_SPLITS * TILE_E)

    out_parts = pl.pallas_call(
        _decoder_kernel,
        out_shape=jax.ShapeDtypeStruct((NUM_SPLITS, C_PAD, n_pad), jnp.float32),
        grid_spec=pltpu.PrefetchScalarGridSpec(
            num_scalar_prefetch=0,
            grid=(NUM_SPLITS, num_tiles),
            in_specs=[
                pl.BlockSpec((2, TILE_E),
                             lambda c, e, nt=num_tiles: (0, c * nt + e)),   # edges
                pl.BlockSpec((h + C_PAD, n_pad), lambda c, e: (0, 0)),      # stacked [h;pos]
                pl.BlockSpec((4, h, h), lambda c, e: (0, 0, 0)),            # weight slab
                pl.BlockSpec((h, 8), lambda c, e: (0, 0)),                  # column slab
            ],
            out_specs=pl.BlockSpec((None, C_PAD, n_pad), lambda c, e: (c, 0, 0)),
        ),
        compiler_params=pltpu.CompilerParams(
            # split axis -> both TensorCores on v7x; edge-tile axis accumulates.
            dimension_semantics=("parallel", "arbitrary"),
            # VMEM use is tiny at these sizes; set vmem_limit_bytes here if TILE_E /
            # n_pad are pushed far beyond the scoped default (32 MiB).
        ),
    )(edges_lane, stacked, w_slab, col_slab)

    # sum the per-split partial aggregations, then apply the periodic wrap once
    diff = jnp.sum(out_parts, axis=0)[:3, :n].T                             # (N, 3)
    l = l_uc.reshape(1, 3).astype(jnp.float32)
    diff = jnp.where(diff > 0.5 * l, diff - l, diff)
    diff = jnp.where(diff < -0.5 * l, diff + l, diff)
    return diff


# ----------------------------------------------------------------------------
# Deterministic parameter init (torch-Linear-style (in, out) weights)
# ----------------------------------------------------------------------------
def init_params(key):
    ks = jax.random.split(key, 6)
    s = 0.1
    H = HIDDEN
    return {
        "emb_w": s * jax.random.normal(ks[0], (LATENT + 1, H), jnp.float32),
        "emb_b": s * jax.random.normal(ks[1], (H,), jnp.float32),
        "we1": s * jax.random.normal(ks[2], (2 * H + 1, H), jnp.float32),
        "be1": jnp.zeros((H,), jnp.float32),
        "we2": s * jax.random.normal(ks[3], (H, H), jnp.float32),
        "be2": jnp.zeros((H,), jnp.float32),
        "wc1": s * jax.random.normal(ks[4], (H, H), jnp.float32),
        "bc1": jnp.zeros((H,), jnp.float32),
        "wc2": s * jax.random.normal(ks[5], (H, 1), jnp.float32),
        "bc2": jnp.zeros((1,), jnp.float32),
    }


if __name__ == "__main__":
    key = jax.random.PRNGKey(0)
    k_param, k_x, k_z, k_pos = jax.random.split(key, 4)

    num_graphs = 2
    nodes_per_graph = 4
    num_nodes = num_graphs * nodes_per_graph                        # N = 8

    # batch assignment and fully-connected (no self-loop) edges per graph
    batch_list, src, dst = [], [], []
    for g in range(num_graphs):
        base = g * nodes_per_graph
        for i in range(nodes_per_graph):
            batch_list.append(g)
            for j in range(nodes_per_graph):
                if i != j:
                    src.append(base + i)
                    dst.append(base + j)
    batch = jnp.array(batch_list, dtype=jnp.int32)                  # (N,)
    edge_index = jnp.array([src, dst], dtype=jnp.int32)             # (2, E), E=24

    l_uc = jnp.array([6.0, 6.0, 6.0], dtype=jnp.float32)            # periodic box
    x = jax.random.normal(k_x, (num_nodes,), jnp.float32)           # per-node scalar
    z = jax.random.normal(k_z, (num_graphs, LATENT), jnp.float32)
    pos = l_uc * jax.random.uniform(k_pos, (num_nodes, 3), jnp.float32)

    params = init_params(k_param)

    out = decoder_forward(x, z, pos, edge_index, batch, num_nodes, params, l_uc)
    out = jax.block_until_ready(out)
    assert out.shape == (num_nodes, 3) and out.dtype == jnp.float32
    assert bool(jnp.all(jnp.isfinite(out)))
    print("KERNEL_OK")
</pallas_src>

<mosaic_0001>
module attributes {stable_mosaic.version = 11 : i64} {
  func.func @_decoder_kernel(%arg0: i32, %arg1: i32, %arg2: memref<2x512xi32, #tpu.memory_space<vmem>>, %arg3: memref<40x128xbf16, #tpu.memory_space<vmem>>, %arg4: memref<4x32x32xf32, #tpu.memory_space<vmem>>, %arg5: memref<32x8xf32, #tpu.memory_space<vmem>>, %arg6: memref<1x8x128xf32, #tpu.memory_space<vmem>>) attributes {dimension_semantics = [#tpu.dimension_semantics<parallel>, #tpu.dimension_semantics<arbitrary>], iteration_bounds = array<i64: 2, 1>, scalar_prefetch = 0 : i64, scratch_operands = 0 : i64, tpu.core_type = #tpu.core_type<tc>, window_params = [{transform_indices = @transform_0, window_bounds = array<i64: 2, 512>}, {pipeline_mode = #tpu.pipeline_mode<synchronous>, transform_indices = @transform_1, window_bounds = array<i64: 40, 128>}, {pipeline_mode = #tpu.pipeline_mode<synchronous>, transform_indices = @transform_2, window_bounds = array<i64: 4, 32, 32>}, {pipeline_mode = #tpu.pipeline_mode<synchronous>, transform_indices = @transform_3, window_bounds = array<i64: 32, 8>}, {transform_indices = @transform_4, window_bounds = array<i64: 1, 8, 128>}]} {
    %c0_i32 = arith.constant 0 : i32
    %0 = arith.cmpi eq, %arg1, %c0_i32 : i32
    %1 = arith.extui %0 : i1 to i32
    %c0_i32_0 = arith.constant 0 : i32
    %2 = arith.cmpi ne, %1, %c0_i32_0 : i32
    scf.if %2 {
      %cst_36 = arith.constant 0.000000e+00 : f32
      %102 = vector.broadcast %cst_36 : f32 to vector<8x128xf32>
      %c0_37 = arith.constant 0 : index
      %c0_38 = arith.constant 0 : index
      %c0_39 = arith.constant 0 : index
      %103 = vector.load %arg6[%c0_37, %c0_38, %c0_39] : memref<1x8x128xf32, #tpu.memory_space<vmem>>, vector<1x8x128xf32>
      %104 = vector.shape_cast %103 : vector<1x8x128xf32> to vector<8x128xf32>
      %105 = vector.shape_cast %102 : vector<8x128xf32> to vector<1x8x128xf32>
      tpu.vector_store %arg6[%c0_37, %c0_38, %c0_39], %105 {strides = array<i32>} : memref<1x8x128xf32, #tpu.memory_space<vmem>>, vector<1x8x128xf32>,
    } else {
    }
    %c0 = arith.constant 0 : index
    %c0_1 = arith.constant 0 : index
    %3 = vector.load %arg2[%c0, %c0_1] : memref<2x512xi32, #tpu.memory_space<vmem>>, vector<1x512xi32>
    %c1 = arith.constant 1 : index
    %c0_2 = arith.constant 0 : index
    %4 = vector.load %arg2[%c1, %c0_2] : memref<2x512xi32, #tpu.memory_space<vmem>>, vector<1x512xi32>
    %5 = tpu.iota {dimensions = array<i32: 0>} : vector<128x1xi32>
    %6 = vector.broadcast %5 : vector<128x1xi32> to vector<128x512xi32>
    %7 = vector.broadcast %3 : vector<1x512xi32> to vector<128x512xi32>
    %8 = arith.cmpi eq, %6, %7 : vector<128x512xi32>
    %9 = arith.extui %8 : vector<128x512xi1> to vector<128x512xi32>
    %10 = arith.sitofp %9 : vector<128x512xi32> to vector<128x512xf32>
    %11 = arith.truncf %10 : vector<128x512xf32> to vector<128x512xbf16>
    %12 = vector.broadcast %5 : vector<128x1xi32> to vector<128x512xi32>
    %13 = vector.broadcast %4 : vector<1x512xi32> to vector<128x512xi32>
    %14 = arith.cmpi eq, %12, %13 : vector<128x512xi32>
    %15 = arith.extui %14 : vector<128x512xi1> to vector<128x512xi32>
    %16 = arith.sitofp %15 : vector<128x512xi32> to vector<128x512xf32>
    %17 = arith.truncf %16 : vector<128x512xf32> to vector<128x512xbf16>
    %c0_3 = arith.constant 0 : index
    %c0_4 = arith.constant 0 : index
    %18 = vector.load %arg3[%c0_3, %c0_4] : memref<40x128xbf16, #tpu.memory_space<vmem>>, vector<40x128xbf16>
    %cst = arith.constant dense<0.000000e+00> : vector<40x512xf32>
    %19 = tpu.matmul %18, %11, %cst {dimension_numbers = #tpu.dot_dimension_numbers<[1], [0], [0], [1], [0, 0, 1, 1], [], []>} : vector<40x128xbf16>, vector<128x512xbf16>, vector<40x512xf32> -> vector<40x512xf32>
    %cst_5 = arith.constant dense<0.000000e+00> : vector<40x512xf32>
    %20 = tpu.matmul %18, %17, %cst_5 {dimension_numbers = #tpu.dot_dimension_numbers<[1], [0], [0], [1], [0, 0, 1, 1], [], []>} : vector<40x128xbf16>, vector<128x512xbf16>, vector<40x512xf32> -> vector<40x512xf32>
    %21 = vector.extract_strided_slice %19 {offsets = [0, 0], sizes = [32, 512], strides = [1, 1]} : vector<40x512xf32> to vector<32x512xf32>
    %22 = vector.extract_strided_slice %20 {offsets = [0, 0], sizes = [32, 512], strides = [1, 1]} : vector<40x512xf32> to vector<32x512xf32>
    %23 = vector.extract_strided_slice %19 {offsets = [32, 0], sizes = [8, 512], strides = [1, 1]} : vector<40x512xf32> to vector<8x512xf32>
    %24 = vector.extract_strided_slice %20 {offsets = [32, 0], sizes = [8, 512], strides = [1, 1]} : vector<40x512xf32> to vector<8x512xf32>
    %25 = arith.subf %23, %24 : vector<8x512xf32>
    %26 = arith.mulf %25, %25 : vector<8x512xf32>
    %cst_6 = arith.constant dense<0.000000e+00> : vector<512xf32>
    %27 = vector.multi_reduction <add>, %26, %cst_6 [0] : vector<8x512xf32> to vector<512xf32>
    %28 = vector.shape_cast %27 : vector<512xf32> to vector<1x512xf32>
    %29 = math.sqrt %28 : vector<1x512xf32>
    %cst_7 = arith.constant 9.99999993E-9 : f32
    %30 = vector.broadcast %cst_7 : f32 to vector<1x512xf32>
    %31 = arith.addf %29, %30 : vector<1x512xf32>
    %32 = tpu.reciprocal %31 {approx = true} : vector<1x512xf32> -> vector<1x512xf32>
    %33 = vector.broadcast %32 : vector<1x512xf32> to vector<8x512xf32>
    %34 = arith.mulf %25, %33 : vector<8x512xf32>
    %c0_8 = arith.constant 0 : index
    %c0_9 = arith.constant 0 : index
    %35 = vector.load %arg5[%c0_8, %c0_9] : memref<32x8xf32, #tpu.memory_space<vmem>>, vector<32x8xf32>
    %36 = vector.extract_strided_slice %35 {offsets = [0, 0], sizes = [32, 1], strides = [1, 1]} : vector<32x8xf32> to vector<32x1xf32>
    %37 = vector.extract_strided_slice %35 {offsets = [0, 1], sizes = [32, 1], strides = [1, 1]} : vector<32x8xf32> to vector<32x1xf32>
    %38 = vector.extract_strided_slice %35 {offsets = [0, 2], sizes = [32, 1], strides = [1, 1]} : vector<32x8xf32> to vector<32x1xf32>
    %39 = vector.extract_strided_slice %35 {offsets = [0, 3], sizes = [32, 1], strides = [1, 1]} : vector<32x8xf32> to vector<32x1xf32>
    %40 = vector.extract_strided_slice %35 {offsets = [0, 4], sizes = [32, 1], strides = [1, 1]} : vector<32x8xf32> to vector<32x1xf32>
    %41 = vector.extract_strided_slice %35 {offsets = [0, 5], sizes = [1, 1], strides = [1, 1]} : vector<32x8xf32> to vector<1x1xf32>
    %c0_10 = arith.constant 0 : index
    %c0_11 = arith.constant 0 : index
    %c0_12 = arith.constant 0 : index
    %42 = vector.load %arg4[%c0_10, %c0_11, %c0_12] : memref<4x32x32xf32, #tpu.memory_space<vmem>>, vector<1x32x32xf32>
    %43 = vector.shape_cast %42 : vector<1x32x32xf32> to vector<32x32xf32>
    %cst_13 = arith.constant dense<0.000000e+00> : vector<32x512xf32>
    %44 = tpu.matmul %43, %21, %cst_13 {dimension_numbers = #tpu.dot_dimension_numbers<[1], [0], [0], [1], [0, 0, 1, 1], [], []>} : vector<32x32xf32>, vector<32x512xf32>, vector<32x512xf32> -> vector<32x512xf32>
    %c1_14 = arith.constant 1 : index
    %c0_15 = arith.constant 0 : index
    %c0_16 = arith.constant 0 : index
    %45 = vector.load %arg4[%c1_14, %c0_15, %c0_16] : memref<4x32x32xf32, #tpu.memory_space<vmem>>, vector<1x32x32xf32>
    %46 = vector.shape_cast %45 : vector<1x32x32xf32> to vector<32x32xf32>
    %cst_17 = arith.constant dense<0.000000e+00> : vector<32x512xf32>
    %47 = tpu.matmul %46, %22, %cst_17 {dimension_numbers = #tpu.dot_dimension_numbers<[1], [0], [0], [1], [0, 0, 1, 1], [], []>} : vector<32x32xf32>, vector<32x512xf32>, vector<32x512xf32> -> vector<32x512xf32>
    %48 = arith.addf %44, %47 : vector<32x512xf32>
    %49 = vector.broadcast %36 : vector<32x1xf32> to vector<32x512xf32>
    %50 = vector.broadcast %28 : vector<1x512xf32> to vector<32x512xf32>
    %51 = arith.mulf %49, %50 : vector<32x512xf32>
    %52 = arith.addf %48, %51 : vector<32x512xf32>
    %53 = vector.broadcast %37 : vector<32x1xf32> to vector<32x512xf32>
    %54 = arith.addf %52, %53 : vector<32x512xf32>
    %55 = arith.negf %54 : vector<32x512xf32>
    %56 = math.exp %55 : vector<32x512xf32>
    %cst_18 = arith.constant 1.000000e+00 : f32
    %57 = vector.broadcast %cst_18 : f32 to vector<32x512xf32>
    %58 = arith.addf %57, %56 : vector<32x512xf32>
    %59 = arith.divf %57, %58 : vector<32x512xf32>
    %60 = arith.mulf %54, %59 : vector<32x512xf32>
    %c2 = arith.constant 2 : index
    %c0_19 = arith.constant 0 : index
    %c0_20 = arith.constant 0 : index
    %61 = vector.load %arg4[%c2, %c0_19, %c0_20] : memref<4x32x32xf32, #tpu.memory_space<vmem>>, vector<1x32x32xf32>
    %62 = vector.shape_cast %61 : vector<1x32x32xf32> to vector<32x32xf32>
    %cst_21 = arith.constant dense<0.000000e+00> : vector<32x512xf32>
    %63 = tpu.matmul %62, %60, %cst_21 {dimension_numbers = #tpu.dot_dimension_numbers<[1], [0], [0], [1], [0, 0, 1, 1], [], []>} : vector<32x32xf32>, vector<32x512xf32>, vector<32x512xf32> -> vector<32x512xf32>
    %64 = vector.broadcast %38 : vector<32x1xf32> to vector<32x512xf32>
    %65 = arith.addf %63, %64 : vector<32x512xf32>
    %66 = arith.negf %65 : vector<32x512xf32>
    %67 = math.exp %66 : vector<32x512xf32>
    %cst_22 = arith.constant 1.000000e+00 : f32
    %68 = vector.broadcast %cst_22 : f32 to vector<32x512xf32>
    %69 = arith.addf %68, %67 : vector<32x512xf32>
    %70 = arith.divf %68, %69 : vector<32x512xf32>
    %71 = arith.mulf %65, %70 : vector<32x512xf32>
    %c3 = arith.constant 3 : index
    %c0_23 = arith.constant 0 : index
    %c0_24 = arith.constant 0 : index
    %72 = vector.load %arg4[%c3, %c0_23, %c0_24] : memref<4x32x32xf32, #tpu.memory_space<vmem>>, vector<1x32x32xf32>
    %73 = vector.shape_cast %72 : vector<1x32x32xf32> to vector<32x32xf32>
    %cst_25 = arith.constant dense<0.000000e+00> : vector<32x512xf32>
    %74 = tpu.matmul %73, %71, %cst_25 {dimension_numbers = #tpu.dot_dimension_numbers<[1], [0], [0], [1], [0, 0, 1, 1], [], []>} : vector<32x32xf32>, vector<32x512xf32>, vector<32x512xf32> -> vector<32x512xf32>
    %75 = vector.broadcast %39 : vector<32x1xf32> to vector<32x512xf32>
    %76 = arith.addf %74, %75 : vector<32x512xf32>
    %77 = arith.negf %76 : vector<32x512xf32>
    %78 = math.exp %77 : vector<32x512xf32>
    %cst_26 = arith.constant 1.000000e+00 : f32
    %79 = vector.broadcast %cst_26 : f32 to vector<32x512xf32>
    %80 = arith.addf %79, %78 : vector<32x512xf32>
    %81 = arith.divf %79, %80 : vector<32x512xf32>
    %82 = arith.mulf %76, %81 : vector<32x512xf32>
    %83 = vector.broadcast %40 : vector<32x1xf32> to vector<32x512xf32>
    %84 = arith.mulf %83, %82 : vector<32x512xf32>
    %cst_27 = arith.constant dense<0.000000e+00> : vector<512xf32>
    %85 = vector.multi_reduction <add>, %84, %cst_27 [0] : vector<32x512xf32> to vector<512xf32>
    %86 = vector.shape_cast %85 : vector<512xf32> to vector<1x512xf32>
    %87 = vector.broadcast %41 : vector<1x1xf32> to vector<1x512xf32>
    %88 = arith.addf %86, %87 : vector<1x512xf32>
    %89 = math.tanh %88 : vector<1x512xf32>
    %cst_28 = arith.constant 1.000000e+01 : f32
    %90 = vector.broadcast %cst_28 : f32 to vector<1x512xf32>
    %91 = arith.mulf %89, %90 : vector<1x512xf32>
    %92 = vector.broadcast %91 : vector<1x512xf32> to vector<8x512xf32>
    %93 = arith.mulf %34, %92 : vector<8x512xf32>
    %94 = arith.truncf %93 : vector<8x512xf32> to vector<8x512xbf16>
    %c0_29 = arith.constant 0 : index
    %c0_30 = arith.constant 0 : index
    %c0_31 = arith.constant 0 : index
    %95 = vector.load %arg6[%c0_29, %c0_30, %c0_31] : memref<1x8x128xf32, #tpu.memory_space<vmem>>, vector<1x8x128xf32>
    %96 = vector.shape_cast %95 : vector<1x8x128xf32> to vector<8x128xf32>
    %cst_32 = arith.constant dense<0.000000e+00> : vector<8x128xf32>
    %97 = tpu.matmul %94, %11, %cst_32 {dimension_numbers = #tpu.dot_dimension_numbers<[1], [1], [0], [0], [0, 0, 1, 0], [], []>} : vector<8x512xbf16>, vector<128x512xbf16>, vector<8x128xf32> -> vector<8x128xf32>
    %98 = arith.addf %96, %97 : vector<8x128xf32>
    %c0_33 = arith.constant 0 : index
    %c0_34 = arith.constant 0 : index
    %c0_35 = arith.constant 0 : index
    %99 = vector.load %arg6[%c0_33, %c0_34, %c0_35] : memref<1x8x128xf32, #tpu.memory_space<vmem>>, vector<1x8x128xf32>
    %100 = vector.shape_cast %99 : vector<1x8x128xf32> to vector<8x128xf32>
    %101 = vector.shape_cast %98 : vector<8x128xf32> to vector<1x8x128xf32>
    tpu.vector_store %arg6[%c0_33, %c0_34, %c0_35], %101 {strides = array<i32>} : memref<1x8x128xf32, #tpu.memory_space<vmem>>, vector<1x8x128xf32>,
    return
  }
  func.func @transform_0(%arg0: i32, %arg1: i32) -> (i32, i32) {
    %c1_i32 = arith.constant 1 : i32
    %0 = arith.muli %arg0, %c1_i32 : i32
    %1 = arith.addi %0, %arg1 : i32
    %c0_i32 = arith.constant 0 : i32
    %c0_i32_0 = arith.constant 0 : i32
    return %c0_i32, %1 : i32, i32
  }
  func.func @transform_1(%arg0: i32, %arg1: i32) -> (i32, i32) {
    %c0_i32 = arith.constant 0 : i32
    %c0_i32_0 = arith.constant 0 : i32
    %c0_i32_1 = arith.constant 0 : i32
    return %c0_i32, %c0_i32_0 : i32, i32
  }
  func.func @transform_2(%arg0: i32, %arg1: i32) -> (i32, i32, i32) {
    %c0_i32 = arith.constant 0 : i32
    %c0_i32_0 = arith.constant 0 : i32
    %c0_i32_1 = arith.constant 0 : i32
    %c0_i32_2 = arith.constant 0 : i32
    return %c0_i32, %c0_i32_0, %c0_i32_1 : i32, i32, i32
  }
  func.func @transform_3(%arg0: i32, %arg1: i32) -> (i32, i32) {
    %c0_i32 = arith.constant 0 : i32
    %c0_i32_0 = arith.constant 0 : i32
    %c0_i32_1 = arith.constant 0 : i32
    return %c0_i32, %c0_i32_0 : i32, i32
  }
  func.func @transform_4(%arg0: i32, %arg1: i32) -> (i32, i32, i32) {
    %c0_i32 = arith.constant 0 : i32
    %c0_i32_0 = arith.constant 0 : i32
    %c0_i32_1 = arith.constant 0 : i32
    return %arg0, %c0_i32, %c0_i32_0 : i32, i32, i32
  }
}

</mosaic_0001>

<llo_original>
// kernel: decoder_forward.1
$region0: #{decoder_forward.1}
  #allocation0 [shape = 'u32[]', space=smem, size = 0x4, offset = 0x4, fixed_abs, tag = 'smem constant byte address 0x4 - core index']
  #allocation1 [shape = 'u32[144,128]{1,0:T(1,128)}', space=vmem, size = 0x12000, scoped, tag = 'internal scratch']
  %s0 = inlined_call_operand.vmem [shape: s32[2,1024], index: 0, kind: input, shape index: {}]
  %s1 = inlined_call_operand.vmem [shape: bf16[40,128], index: 1, kind: input, shape index: {}]
  %s2 = inlined_call_operand.vmem [shape: f32[4,32,32], index: 2, kind: input, shape index: {}]
  %s3 = inlined_call_operand.vmem [shape: f32[32,8], index: 3, kind: input, shape index: {}]
  %s4 = inlined_call_operand.vmem [shape: f32[2,8,128], index: 4, kind: output, shape index: {}]
  %s5 = sld [smem:[#allocation0]]
  $region53: #{decoder_forward.1} parent=0
    _
  %s7 = ssub.s32 1, %s5
  %s8 = scalar_select 0, %s7, %s5
  loop: start=0, step=1, limit=4
  $region2: #{decoder_forward.1} parent=0 // loop_pre_header
    _
  $region3: #{decoder_forward.1} parent=0 // loop_header
    %s10 = sphi 0, %s14
    %p11 = scmp.ge.s32.totalorder %s10, 4
    %s17 = sphi 0, %s29
    %s18 = sphi 0, %s25
    %s19 = sphi 0, %s17
    %s20 = sphi 0, %s18
    %s21 = sphi 0, %s19
    %s22 = sphi 0, %s20
    %s34 = sphi 0, %s36
    %s37 = sphi 0, %s34
    %s38 = sphi 0, %s37
    %s54 = sphi 0, %s38
    %s58 = sphi 0, %s58
    %s60 = sphi 0, %s58
    %s61 = sphi 0, %s60
    %s75 = sphi 0, %s61
    %s79 = sphi 0, %s79
    %s81 = sphi 0, %s79
    %s82 = sphi 0, %s81
    %s96 = sphi 0, %s82
    %s100 = sphi 0, %s100
    %s102 = sphi 0, %s100
    %s103 = sphi 0, %s102
    %s117 = sphi 0, %s103
    %s123 = sphi 0, %s125
    %s126 = sphi 0, %s123
    %s127 = sphi 0, %s126
    %s143 = sphi 0, %s127
  $region4: #{decoder_forward.1} parent=0 // loop_header_branch
    %13 = sbr.rel (%p11) target = $region8
  $region5: #{decoder_forward.1} parent=0 // loop_body
    %s15 = ssub.s32 %s10, 1
    %s16 = ssub.s32 %s10, 2
    %s23 = sadd.s32 1, %s18
    %p24 = scmp.ge.s32.totalorder %s23, 1
    %s25 = scalar_select %p24, 0, %s23
    %s26 = sadd.s32 1, %s17
    %s27 = scalar_select %p24, %s26, %s17
    %p28 = scmp.ge.s32.totalorder %s27, 2
    %s29 = scalar_select %p28, 0, %s27
    %s30 = sadd.s32 %s17, %s18
    %s31 = sadd.s32 %s29, %s25
    %s32 = ssub.s32 %s30, %s31
    %p33 = scmp.eq.s32.totalorder %s32, 0
    %s35 = sadd.s32 %s34, 1
    %s36 = scalar_select %p33, %s34, %s35
    %p39 = pneg %p33
    %p40 = scmp.eq.s32.totalorder %s10, 1
    %p41 = por %p39, %p40
    %p42 = scmp.ne.s32.totalorder %s34, %s37
    %p43 = scmp.eq.s32.totalorder %s10, 0
    %p44 = por %p42, %p43
    %p45 = scmp.ne.s32.totalorder %s34, %s37
    %p46 = scmp.eq.s32.totalorder %s15, 1
    %p47 = por %p45, %p46
    %p48 = scmp.ne.s32.totalorder %s37, %s38
    %p49 = scmp.eq.s32.totalorder %s15, 0
    %p50 = por %p48, %p49
    %p51 = scmp.ne.s32.totalorder %s37, %s38
    %p52 = scmp.eq.s32.totalorder %s16, 1
    %p53 = por %p51, %p52
    %p55 = scmp.ne.s32.totalorder %s38, %s54
    %p56 = scmp.eq.s32.totalorder %s16, 0
    %p57 = por %p55, %p56
    %s59 = sadd.s32 %s58, 1
    %p62 = scmp.eq.s32.totalorder %s10, 1
    %p63 = scmp.ne.s32.totalorder %s58, %s60
    %p64 = scmp.eq.s32.totalorder %s10, 0
    %p65 = por %p63, %p64
    %p66 = scmp.ne.s32.totalorder %s58, %s60
    %p67 = scmp.eq.s32.totalorder %s15, 1
    %p68 = por %p66, %p67
    %p69 = scmp.ne.s32.totalorder %s60, %s61
    %p70 = scmp.eq.s32.totalorder %s15, 0
    %p71 = por %p69, %p70
    %p72 = scmp.ne.s32.totalorder %s60, %s61
    %p73 = scmp.eq.s32.totalorder %s16, 1
    %p74 = por %p72, %p73
    %p76 = scmp.ne.s32.totalorder %s61, %s75
    %p77 = scmp.eq.s32.totalorder %s16, 0
    %p78 = por %p76, %p77
    %s80 = sadd.s32 %s79, 1
    %p83 = scmp.eq.s32.totalorder %s10, 1
    %p84 = scmp.ne.s32.totalorder %s79, %s81
    %p85 = scmp.eq.s32.totalorder %s10, 0
    %p86 = por %p84, %p85
    %p87 = scmp.ne.s32.totalorder %s79, %s81
    %p88 = scmp.eq.s32.totalorder %s15, 1
    %p89 = por %p87, %p88
    %p90 = scmp.ne.s32.totalorder %s81, %s82
    %p91 = scmp.eq.s32.totalorder %s15, 0
    %p92 = por %p90, %p91
    %p93 = scmp.ne.s32.totalorder %s81, %s82
    %p94 = scmp.eq.s32.totalorder %s16, 1
    %p95 = por %p93, %p94
    %p97 = scmp.ne.s32.totalorder %s82, %s96
    %p98 = scmp.eq.s32.totalorder %s16, 0
    %p99 = por %p97, %p98
    %s101 = sadd.s32 %s100, 1
    %p104 = scmp.eq.s32.totalorder %s10, 1
    %p105 = scmp.ne.s32.totalorder %s100, %s102
    %p106 = scmp.eq.s32.totalorder %s10, 0
    %p107 = por %p105, %p106
    %p108 = scmp.ne.s32.totalorder %s100, %s102
    %p109 = scmp.eq.s32.totalorder %s15, 1
    %p110 = por %p108, %p109
    %p111 = scmp.ne.s32.totalorder %s102, %s103
    %p112 = scmp.eq.s32.totalorder %s15, 0
    %p113 = por %p111, %p112
    %p114 = scmp.ne.s32.totalorder %s102, %s103
    %p115 = scmp.eq.s32.totalorder %s16, 1
    %p116 = por %p114, %p115
    %p118 = scmp.ne.s32.totalorder %s103, %s117
    %p119 = scmp.eq.s32.totalorder %s16, 0
    %p120 = por %p118, %p119
    %s121 = ssub.s32 %s17, %s29
    %p122 = scmp.eq.s32.totalorder %s121, 0
    %s124 = sadd.s32 %s123, 1
    %s125 = scalar_select %p122, %s123, %s124
    %p128 = pneg %p122
    %p129 = scmp.eq.s32.totalorder %s10, 1
    %p130 = por %p128, %p129
    %p131 = scmp.ne.s32.totalorder %s123, %s126
    %p132 = scmp.eq.s32.totalorder %s10, 0
    %p133 = por %p131, %p132
    %p134 = scmp.ne.s32.totalorder %s123, %s126
    %p135 = scmp.eq.s32.totalorder %s15, 1
    %p136 = por %p134, %p135
    %p137 = scmp.ne.s32.totalorder %s126, %s127
    %p138 = scmp.eq.s32.totalorder %s15, 0
    %p139 = por %p137, %p138
    %p140 = scmp.ne.s32.totalorder %s126, %s127
    %p141 = scmp.eq.s32.totalorder %s16, 1
    %p142 = por %p140, %p141
    %p144 = scmp.ne.s32.totalorder %s127, %s143
    %p145 = scmp.eq.s32.totalorder %s16, 0
    %p146 = por %p144, %p145
    %p147 = scmp.le.s32.totalorder 1, %s10
    %p148 = scmp.lt.s32.totalorder %s10, 3
    %p149 = pnand %p147, %p148
    %p150 = pneg %p149
    // Predicated region
    $region9: #{decoder_forward.1} parent=5 // pred_check
      _
    $region10: #{decoder_forward.1} parent=5 // pred_check_branch
      %152 = sbr.rel (%p149) target = $region12
    $region11: #{decoder_forward.1} parent=5 // pred_region
      %s153 = ssub.s32 %s10, 1
      // Predicated region
      $region13: #{decoder_forward.1} parent=11 // pred_check
        %p154 = pneg %p71
      $region14: #{decoder_forward.1} parent=11 // pred_check_branch
        %156 = sbr.rel (%p154) target = $region16
      $region15: #{decoder_forward.1} parent=11 // pred_region
        _
      $region16: #{decoder_forward.1} parent=11 // pred_fallthru
        _
      // Predicated region
      $region17: #{decoder_forward.1} parent=11 // pred_check
        %p157 = pneg %p92
      $region18: #{decoder_forward.1} parent=11 // pred_check_branch
        %159 = sbr.rel (%p157) target = $region20
      $region19: #{decoder_forward.1} parent=11 // pred_region
        _
      $region20: #{decoder_forward.1} parent=11 // pred_fallthru
        _
      // Predicated region
      $region21: #{decoder_forward.1} parent=11 // pred_check
        %p160 = pneg %p113
      $region22: #{decoder_forward.1} parent=11 // pred_check_branch
        %162 = sbr.rel (%p160) target = $region24
      $region23: #{decoder_forward.1} parent=11 // pred_region
        _
      $region24: #{decoder_forward.1} parent=11 // pred_fallthru
        _
    $region12: #{decoder_forward.1} parent=5 // pred_fallthru
      _
    %p163 = scmp.lt.s32.totalorder %s10, 2
    // Predicated region
    $region25: #{decoder_forward.1} parent=5 // pred_check
      %p164 = pneg %p163
    $region26: #{decoder_forward.1} parent=5 // pred_check_branch
      %166 = sbr.rel (%p164) target = $region28
    $region27: #{decoder_forward.1} parent=5 // pred_region
      // Predicated region
      $region29: #{decoder_forward.1} parent=27 // pred_check
        %p167 = pneg %p44
      $region30: #{decoder_forward.1} parent=27 // pred_check_branch
        %169 = sbr.rel (%p167) target = $region32
      $region31: #{decoder_forward.1} parent=27 // pred_region
        %s170 = sadd.s32 %s17, %s18
        %s171 = smul.u32 4, %s170
        %p172 = scmp.lt.s32.totalorder %s171, 7
        %s173 = scalar_select %p172, %s171, 7
        %s174 = smul.addr %s173, 2
        %s175 = scalar_lea.vmem %s0, %s174
        %s176 = sadd.s32 %s17, %s18
        %s177 = smul.u32 4, %s176
      $region32: #{decoder_forward.1} parent=27 // pred_fallthru
        _
    $region28: #{decoder_forward.1} parent=5 // pred_fallthru
      _
    %p178 = scmp.le.s32.totalorder 1, %s10
    %p179 = scmp.lt.s32.totalorder %s10, 3
    %p180 = pnand %p178, %p179
    %p181 = pneg %p180
    // Predicated region
    $region33: #{decoder_forward.1} parent=5 // pred_check
      _
    $region34: #{decoder_forward.1} parent=5 // pred_check_branch
      %183 = sbr.rel (%p180) target = $region36
    $region35: #{decoder_forward.1} parent=5 // pred_region
      %s184 = ssub.s32 %s10, 1
      %s185 = sadd.s32 %s19, %s20
      %s186 = smul.u32 4, %s185
      %p187 = scmp.lt.s32.totalorder %s186, 7
      %s188 = scalar_select %p187, %s186, 7
      %s189 = smul.addr %s188, 2
      %s190 = scalar_lea.vmem %s0, %s189
      %p191 = pneg %p50
      %p192 = pneg %p47
      %p193 = pneg %p71
      %p194 = pneg %p68
      %p195 = pneg %p92
      %p196 = pneg %p89
      %p197 = pneg %p113
      %p198 = pneg %p110
      %p199 = pneg %p139
      %p200 = pneg %p136
      %p201 = scmp.lt.s32.totalorder %s19, 1
      %s202 = scalar_select %p201, %s19, 1
      %s203 = smul.addr %s202, 8
      %s204 = scalar_lea.vmem %s4, %s203
      %s205 = sadd.s32 %s19, %s20
      %s206 = smul.u32 4, %s205
      %p207 = scmp.lt.s32.totalorder %s206, 7
      %s208 = scalar_select %p207, %s206, 7
      %s209 = smul.addr %s208, 2
      %s210 = scalar_lea.vmem %s0, %s209
      %s211 = sadd.s32 %s19, %s20
      %s212 = smul.u32 4, %s211
      %p213 = scmp.lt.s32.totalorder %s19, 1
      %s214 = scalar_select %p213, %s19, 1
      %s215 = smul.addr %s214, 8
      %s216 = scalar_lea.vmem %s4, %s215
      %p218 = scmp.eq.s32.totalorder %s20, 0
      // Predicated region
      $region37: #{decoder_forward.1} parent=35 // pred_check
        %p219 = pneg %p218
      $region38: #{decoder_forward.1} parent=35 // pred_check_branch
        %221 = sbr.rel (%p219) target = $region40
      $region39: #{decoder_forward.1} parent=35 // pred_region
        %222 = vst [vmem:[%s216] sm:$0xff] 0.0
      $region40: #{decoder_forward.1} parent=35 // pred_fallthru
        _
      %v223 = vld [vmem:[%s210] ss:$2 sm:$0xf]
      %s224 = scalar_lea.vmem %s210, 1
      %v225 = vld [vmem:[%s224] ss:$2 sm:$0xf]
      %v226 = vlaneseq
      %v227 = vshrl.u32 %v226, 7
      %v228 = vadd.s32 %v227, 8
      %v229 = vadd.s32 %v227, 16
      %v230 = vadd.s32 %v227, 24
      %v231 = vadd.s32 %v227, 32
      %v232 = vadd.s32 %v227, 40
      %v233 = vadd.s32 %v227, 48
      %v234 = vadd.s32 %v227, 56
      %v235 = vadd.s32 %v227, 64
      %v236 = vadd.s32 %v227, 72
      %v237 = vadd.s32 %v227, 80
      %v238 = vadd.s32 %v227, 88
      %v239 = vadd.s32 %v227, 96
      %v240 = vadd.s32 %v227, 104
      %v241 = vadd.s32 %v227, 112
      %v242 = vadd.s32 %v227, 120
      %v243 = vlaneseq
      %v244 = vshrl.u32 %v243, 7
      %v245 = vsub.s32 0, %v244
      %v246 = vrot.slane %v223, %v245
      %v247 = vlaneseq
      %v248 = vshrl.u32 %v247, 7
      %v249 = vsub.s32 1, %v248
      %v250 = vrot.slane %v223, %v249
      %v251 = vlaneseq
      %v252 = vshrl.u32 %v251, 7
      %v253 = vsub.s32 2, %v252
      %v254 = vrot.slane %v223, %v253
      %v255 = vlaneseq
      %v256 = vshrl.u32 %v255, 7
      %v257 = vsub.s32 3, %v256
      %v258 = vrot.slane %v223, %v257
      %vm259 = vcmp.eq.s32.totalorder %v227, %v246
      %vm260 = vcmp.eq.s32.totalorder %v227, %v250
      %vm261 = vcmp.eq.s32.totalorder %v227, %v254
      %vm262 = vcmp.eq.s32.totalorder %v227, %v258
      %vm263 = vcmp.eq.s32.totalorder %v228, %v246
      %vm264 = vcmp.eq.s32.totalorder %v228, %v250
      %vm265 = vcmp.eq.s32.totalorder %v228, %v254
      %vm266 = vcmp.eq.s32.totalorder %v228, %v258
      %vm267 = vcmp.eq.s32.totalorder %v229, %v246
      %vm268 = vcmp.eq.s32.totalorder %v229, %v250
      %vm269 = vcmp.eq.s32.totalorder %v229, %v254
      %vm270 = vcmp.eq.s32.totalorder %v229, %v258
      %vm271 = vcmp.eq.s32.totalorder %v230, %v246
      %vm272 = vcmp.eq.s32.totalorder %v230, %v250
      %vm273 = vcmp.eq.s32.totalorder %v230, %v254
      %vm274 = vcmp.eq.s32.totalorder %v230, %v258
      %vm275 = vcmp.eq.s32.totalorder %v231, %v246
      %vm276 = vcmp.eq.s32.totalorder %v231, %v250
      %vm277 = vcmp.eq.s32.totalorder %v231, %v254
      %vm278 = vcmp.eq.s32.totalorder %v231, %v258
      %vm279 = vcmp.eq.s32.totalorder %v232, %v246
      %vm280 = vcmp.eq.s32.totalorder %v232, %v250
      %vm281 = vcmp.eq.s32.totalorder %v232, %v254
      %vm282 = vcmp.eq.s32.totalorder %v232, %v258
      %vm283 = vcmp.eq.s32.totalorder %v233, %v246
      %vm284 = vcmp.eq.s32.totalorder %v233, %v250
      %vm285 = vcmp.eq.s32.totalorder %v233, %v254
      %vm286 = vcmp.eq.s32.totalorder %v233, %v258
      %vm287 = vcmp.eq.s32.totalorder %v234, %v246
      %vm288 = vcmp.eq.s32.totalorder %v234, %v250
      %vm289 = vcmp.eq.s32.totalorder %v234, %v254
      %vm290 = vcmp.eq.s32.totalorder %v234, %v258
      %vm291 = vcmp.eq.s32.totalorder %v235, %v246
      %vm292 = vcmp.eq.s32.totalorder %v235, %v250
      %vm293 = vcmp.eq.s32.totalorder %v235, %v254
      %vm294 = vcmp.eq.s32.totalorder %v235, %v258
      %vm295 = vcmp.eq.s32.totalorder %v236, %v246
      %vm296 = vcmp.eq.s32.totalorder %v236, %v250
      %vm297 = vcmp.eq.s32.totalorder %v236, %v254
      %vm298 = vcmp.eq.s32.totalorder %v236, %v258
      %vm299 = vcmp.eq.s32.totalorder %v237, %v246
      %vm300 = vcmp.eq.s32.totalorder %v237, %v250
      %vm301 = vcmp.eq.s32.totalorder %v237, %v254
      %vm302 = vcmp.eq.s32.totalorder %v237, %v258
      %vm303 = vcmp.eq.s32.totalorder %v238, %v246
      %vm304 = vcmp.eq.s32.totalorder %v238, %v250
      %vm305 = vcmp.eq.s32.totalorder %v238, %v254
      %vm306 = vcmp.eq.s32.totalorder %v238, %v258
      %vm307 = vcmp.eq.s32.totalorder %v239, %v246
      %vm308 = vcmp.eq.s32.totalorder %v239, %v250
      %vm309 = vcmp.eq.s32.totalorder %v239, %v254
      %vm310 = vcmp.eq.s32.totalorder %v239, %v258
      %vm311 = vcmp.eq.s32.totalorder %v240, %v246
      %vm312 = vcmp.eq.s32.totalorder %v240, %v250
      %vm313 = vcmp.eq.s32.totalorder %v240, %v254
      %vm314 = vcmp.eq.s32.totalorder %v240, %v258
      %vm315 = vcmp.eq.s32.totalorder %v241, %v246
      %vm316 = vcmp.eq.s32.totalorder %v241, %v250
      %vm317 = vcmp.eq.s32.totalorder %v241, %v254
      %vm318 = vcmp.eq.s32.totalorder %v241, %v258
      %vm319 = vcmp.eq.s32.totalorder %v242, %v246
      %vm320 = vcmp.eq.s32.totalorder %v242, %v250
      %vm321 = vcmp.eq.s32.totalorder %v242, %v254
      %vm322 = vcmp.eq.s32.totalorder %v242, %v258
      %v323 = vsel %vm259, 1, 0
      %v324 = vsel %vm260, 1, 0
      %v325 = vsel %vm261, 1, 0
      %v326 = vsel %vm262, 1, 0
      %v327 = vsel %vm263, 1, 0
      %v328 = vsel %vm264, 1, 0
      %v329 = vsel %vm265, 1, 0
      %v330 = vsel %vm266, 1, 0
      %v331 = vsel %vm267, 1, 0
      %v332 = vsel %vm268, 1, 0
      %v333 = vsel %vm269, 1, 0
      %v334 = vsel %vm270, 1, 0
      %v335 = vsel %vm271, 1, 0
      %v336 = vsel %vm272, 1, 0
      %v337 = vsel %vm273, 1, 0
      %v338 = vsel %vm274, 1, 0
      %v339 = vsel %vm275, 1, 0
      %v340 = vsel %vm276, 1, 0
      %v341 = vsel %vm277, 1, 0
      %v342 = vsel %vm278, 1, 0
      %v343 = vsel %vm279, 1, 0
      %v344 = vsel %vm280, 1, 0
      %v345 = vsel %vm281, 1, 0
      %v346 = vsel %vm282, 1, 0
      %v347 = vsel %vm283, 1, 0
      %v348 = vsel %vm284, 1, 0
      %v349 = vsel %vm285, 1, 0
      %v350 = vsel %vm286, 1, 0
      %v351 = vsel %vm287, 1, 0
      %v352 = vsel %vm288, 1, 0
      %v353 = vsel %vm289, 1, 0
      %v354 = vsel %vm290, 1, 0
      %v355 = vsel %vm291, 1, 0
      %v356 = vsel %vm292, 1, 0
      %v357 = vsel %vm293, 1, 0
      %v358 = vsel %vm294, 1, 0
      %v359 = vsel %vm295, 1, 0
      %v360 = vsel %vm296, 1, 0
      %v361 = vsel %vm297, 1, 0
      %v362 = vsel %vm298, 1, 0
      %v363 = vsel %vm299, 1, 0
      %v364 = vsel %vm300, 1, 0
      %v365 = vsel %vm301, 1, 0
      %v366 = vsel %vm302, 1, 0
      %v367 = vsel %vm303, 1, 0
      %v368 = vsel %vm304, 1, 0
      %v369 = vsel %vm305, 1, 0
      %v370 = vsel %vm306, 1, 0
      %v371 = vsel %vm307, 1, 0
      %v372 = vsel %vm308, 1, 0
      %v373 = vsel %vm309, 1, 0
      %v374 = vsel %vm310, 1, 0
      %v375 = vsel %vm311, 1, 0
      %v376 = vsel %vm312, 1, 0
      %v377 = vsel %vm313, 1, 0
      %v378 = vsel %vm314, 1, 0
      %v379 = vsel %vm315, 1, 0
      %v380 = vsel %vm316, 1, 0
      %v381 = vsel %vm317, 1, 0
      %v382 = vsel %vm318, 1, 0
      %v383 = vsel %vm319, 1, 0
      %v384 = vsel %vm320, 1, 0
      %v385 = vsel %vm321, 1, 0
      %v386 = vsel %vm322, 1, 0
      %v387 = vcvt.s32.f32 %v323
      %v388 = vcvt.s32.f32 %v324
      %v389 = vcvt.s32.f32 %v325
      %v390 = vcvt.s32.f32 %v326
      %v391 = vcvt.s32.f32 %v327
      %v392 = vcvt.s32.f32 %v328
      %v393 = vcvt.s32.f32 %v329
      %v394 = vcvt.s32.f32 %v330
      %v395 = vcvt.s32.f32 %v331
      %v396 = vcvt.s32.f32 %v332
      %v397 = vcvt.s32.f32 %v333
      %v398 = vcvt.s32.f32 %v334
      %v399 = vcvt.s32.f32 %v335
      %v400 = vcvt.s32.f32 %v336
      %v401 = vcvt.s32.f32 %v337
      %v402 = vcvt.s32.f32 %v338
      %v403 = vcvt.s32.f32 %v339
      %v404 = vcvt.s32.f32 %v340
      %v405 = vcvt.s32.f32 %v341
      %v406 = vcvt.s32.f32 %v342
      %v407 = vcvt.s32.f32 %v343
      %v408 = vcvt.s32.f32 %v344
      %v409 = vcvt.s32.f32 %v345
      %v410 = vcvt.s32.f32 %v346
      %v411 = vcvt.s32.f32 %v347
      %v412 = vcvt.s32.f32 %v348
      %v413 = vcvt.s32.f32 %v349
      %v414 = vcvt.s32.f32 %v350
      %v415 = vcvt.s32.f32 %v351
      %v416 = vcvt.s32.f32 %v352
      %v417 = vcvt.s32.f32 %v353
      %v418 = vcvt.s32.f32 %v354
      %v419 = vcvt.s32.f32 %v355
      %v420 = vcvt.s32.f32 %v356
      %v421 = vcvt.s32.f32 %v357
      %v422 = vcvt.s32.f32 %v358
      %v423 = vcvt.s32.f32 %v359
      %v424 = vcvt.s32.f32 %v360
      %v425 = vcvt.s32.f32 %v361
      %v426 = vcvt.s32.f32 %v362
      %v427 = vcvt.s32.f32 %v363
      %v428 = vcvt.s32.f32 %v364
      %v429 = vcvt.s32.f32 %v365
      %v430 = vcvt.s32.f32 %v366
      %v431 = vcvt.s32.f32 %v367
      %v432 = vcvt.s32.f32 %v368
      %v433 = vcvt.s32.f32 %v369
      %v434 = vcvt.s32.f32 %v370
      %v435 = vcvt.s32.f32 %v371
      %v436 = vcvt.s32.f32 %v372
      %v437 = vcvt.s32.f32 %v373
      %v438 = vcvt.s32.f32 %v374
      %v439 = vcvt.s32.f32 %v375
      %v440 = vcvt.s32.f32 %v376
      %v441 = vcvt.s32.f32 %v377
      %v442 = vcvt.s32.f32 %v378
      %v443 = vcvt.s32.f32 %v379
      %v444 = vcvt.s32.f32 %v380
      %v445 = vcvt.s32.f32 %v381
      %v446 = vcvt.s32.f32 %v382
      %v447 = vcvt.s32.f32 %v383
      %v448 = vcvt.s32.f32 %v384
      %v449 = vcvt.s32.f32 %v385
      %v450 = vcvt.s32.f32 %v386
      %v451 = vpack.c.bf16 %v391, %v387
      %v452 = vpack.c.bf16 %v392, %v388
      %v453 = vpack.c.bf16 %v393, %v389
      %v454 = vpack.c.bf16 %v394, %v390
      %v455 = vpack.c.bf16 %v399, %v395
      %v456 = vpack.c.bf16 %v400, %v396
      %v457 = vpack.c.bf16 %v401, %v397
      %v458 = vpack.c.bf16 %v402, %v398
      %v459 = vpack.c.bf16 %v407, %v403
      %v460 = vpack.c.bf16 %v408, %v404
      %v461 = vpack.c.bf16 %v409, %v405
      %v462 = vpack.c.bf16 %v410, %v406
      %v463 = vpack.c.bf16 %v415, %v411
      %v464 = vpack.c.bf16 %v416, %v412
      %v465 = vpack.c.bf16 %v417, %v413
      %v466 = vpack.c.bf16 %v418, %v414
      %v467 = vpack.c.bf16 %v423, %v419
      %v468 = vpack.c.bf16 %v424, %v420
      %v469 = vpack.c.bf16 %v425, %v421
      %v470 = vpack.c.bf16 %v426, %v422
      %v471 = vpack.c.bf16 %v431, %v427
      %v472 = vpack.c.bf16 %v432, %v428
      %v473 = vpack.c.bf16 %v433, %v429
      %v474 = vpack.c.bf16 %v434, %v430
      %v475 = vpack.c.bf16 %v439, %v435
      %v476 = vpack.c.bf16 %v440, %v436
      %v477 = vpack.c.bf16 %v441, %v437
      %v478 = vpack.c.bf16 %v442, %v438
      %v479 = vpack.c.bf16 %v447, %v443
      %v480 = vpack.c.bf16 %v448, %v444
      %v481 = vpack.c.bf16 %v449, %v445
      %v482 = vpack.c.bf16 %v450, %v446
      %v483 = vlaneseq
      %v484 = vshrl.u32 %v483, 7
      %v485 = vsub.s32 0, %v484
      %v486 = vrot.slane %v225, %v485
      %v487 = vlaneseq
      %v488 = vshrl.u32 %v487, 7
      %v489 = vsub.s32 1, %v488
      %v490 = vrot.slane %v225, %v489
      %v491 = vlaneseq
      %v492 = vshrl.u32 %v491, 7
      %v493 = vsub.s32 2, %v492
      %v494 = vrot.slane %v225, %v493
      %v495 = vlaneseq
      %v496 = vshrl.u32 %v495, 7
      %v497 = vsub.s32 3, %v496
      %v498 = vrot.slane %v225, %v497
      %vm499 = vcmp.eq.s32.totalorder %v227, %v486
      %vm500 = vcmp.eq.s32.totalorder %v227, %v490
      %vm501 = vcmp.eq.s32.totalorder %v227, %v494
      %vm502 = vcmp.eq.s32.totalorder %v227, %v498
      %vm503 = vcmp.eq.s32.totalorder %v228, %v486
      %vm504 = vcmp.eq.s32.totalorder %v228, %v490
      %vm505 = vcmp.eq.s32.totalorder %v228, %v494
      %vm506 = vcmp.eq.s32.totalorder %v228, %v498
      %vm507 = vcmp.eq.s32.totalorder %v229, %v486
      %vm508 = vcmp.eq.s32.totalorder %v229, %v490
      %vm509 = vcmp.eq.s32.totalorder %v229, %v494
      %vm510 = vcmp.eq.s32.totalorder %v229, %v498
      %vm511 = vcmp.eq.s32.totalorder %v230, %v486
      %vm512 = vcmp.eq.s32.totalorder %v230, %v490
      %vm513 = vcmp.eq.s32.totalorder %v230, %v494
      %vm514 = vcmp.eq.s32.totalorder %v230, %v498
      %vm515 = vcmp.eq.s32.totalorder %v231, %v486
      %vm516 = vcmp.eq.s32.totalorder %v231, %v490
      %vm517 = vcmp.eq.s32.totalorder %v231, %v494
      %vm518 = vcmp.eq.s32.totalorder %v231, %v498
      %vm519 = vcmp.eq.s32.totalorder %v232, %v486
      %vm520 = vcmp.eq.s32.totalorder %v232, %v490
      %vm521 = vcmp.eq.s32.totalorder %v232, %v494
      %vm522 = vcmp.eq.s32.totalorder %v232, %v498
      %vm523 = vcmp.eq.s32.totalorder %v233, %v486
      %vm524 = vcmp.eq.s32.totalorder %v233, %v490
      %vm525 = vcmp.eq.s32.totalorder %v233, %v494
      %vm526 = vcmp.eq.s32.totalorder %v233, %v498
      %vm527 = vcmp.eq.s32.totalorder %v234, %v486
      %vm528 = vcmp.eq.s32.totalorder %v234, %v490
      %vm529 = vcmp.eq.s32.totalorder %v234, %v494
      %vm530 = vcmp.eq.s32.totalorder %v234, %v498
      %vm531 = vcmp.eq.s32.totalorder %v235, %v486
      %vm532 = vcmp.eq.s32.totalorder %v235, %v490
      %vm533 = vcmp.eq.s32.totalorder %v235, %v494
      %vm534 = vcmp.eq.s32.totalorder %v235, %v498
      %vm535 = vcmp.eq.s32.totalorder %v236, %v486
      %vm536 = vcmp.eq.s32.totalorder %v236, %v490
      %vm537 = vcmp.eq.s32.totalorder %v236, %v494
      %vm538 = vcmp.eq.s32.totalorder %v236, %v498
      %vm539 = vcmp.eq.s32.totalorder %v237, %v486
      %vm540 = vcmp.eq.s32.totalorder %v237, %v490
      %vm541 = vcmp.eq.s32.totalorder %v237, %v494
      %vm542 = vcmp.eq.s32.totalorder %v237, %v498
      %vm543 = vcmp.eq.s32.totalorder %v238, %v486
      %vm544 = vcmp.eq.s32.totalorder %v238, %v490
      %vm545 = vcmp.eq.s32.totalorder %v238, %v494
      %vm546 = vcmp.eq.s32.totalorder %v238, %v498
      %vm547 = vcmp.eq.s32.totalorder %v239, %v486
      %vm548 = vcmp.eq.s32.totalorder %v239, %v490
      %vm549 = vcmp.eq.s32.totalorder %v239, %v494
      %vm550 = vcmp.eq.s32.totalorder %v239, %v498
      %vm551 = vcmp.eq.s32.totalorder %v240, %v486
      %vm552 = vcmp.eq.s32.totalorder %v240, %v490
      %vm553 = vcmp.eq.s32.totalorder %v240, %v494
      %vm554 = vcmp.eq.s32.totalorder %v240, %v498
      %vm555 = vcmp.eq.s32.totalorder %v241, %v486
      %vm556 = vcmp.eq.s32.totalorder %v241, %v490
      %vm557 = vcmp.eq.s32.totalorder %v241, %v494
      %vm558 = vcmp.eq.s32.totalorder %v241, %v498
      %vm559 = vcmp.eq.s32.totalorder %v242, %v486
      %vm560 = vcmp.eq.s32.totalorder %v242, %v490
      %vm561 = vcmp.eq.s32.totalorder %v242, %v494
      %vm562 = vcmp.eq.s32.totalorder %v242, %v498
      %v563 = vsel %vm499, 1, 0
      %v564 = vsel %vm500, 1, 0
      %v565 = vsel %vm501, 1, 0
      %v566 = vsel %vm502, 1, 0
      %v567 = vsel %vm503, 1, 0
      %v568 = vsel %vm504, 1, 0
      %v569 = vsel %vm505, 1, 0
      %v570 = vsel %vm506, 1, 0
      %v571 = vsel %vm507, 1, 0
      %v572 = vsel %vm508, 1, 0
      %v573 = vsel %vm509, 1, 0
      %v574 = vsel %vm510, 1, 0
      %v575 = vsel %vm511, 1, 0
      %v576 = vsel %vm512, 1, 0
      %v577 = vsel %vm513, 1, 0
      %v578 = vsel %vm514, 1, 0
      %v579 = vsel %vm515, 1, 0
      %v580 = vsel %vm516, 1, 0
      %v581 = vsel %vm517, 1, 0
      %v582 = vsel %vm518, 1, 0
      %v583 = vsel %vm519, 1, 0
      %v584 = vsel %vm520, 1, 0
      %v585 = vsel %vm521, 1, 0
      %v586 = vsel %vm522, 1, 0
      %v587 = vsel %vm523, 1, 0
      %v588 = vsel %vm524, 1, 0
      %v589 = vsel %vm525, 1, 0
      %v590 = vsel %vm526, 1, 0
      %v591 = vsel %vm527, 1, 0
      %v592 = vsel %vm528, 1, 0
      %v593 = vsel %vm529, 1, 0
      %v594 = vsel %vm530, 1, 0
      %v595 = vsel %vm531, 1, 0
      %v596 = vsel %vm532, 1, 0
      %v597 = vsel %vm533, 1, 0
      %v598 = vsel %vm534, 1, 0
      %v599 = vsel %vm535, 1, 0
      %v600 = vsel %vm536, 1, 0
      %v601 = vsel %vm537, 1, 0
      %v602 = vsel %vm538, 1, 0
      %v603 = vsel %vm539, 1, 0
      %v604 = vsel %vm540, 1, 0
      %v605 = vsel %vm541, 1, 0
      %v606 = vsel %vm542, 1, 0
      %v607 = vsel %vm543, 1, 0
      %v608 = vsel %vm544, 1, 0
      %v609 = vsel %vm545, 1, 0
      %v610 = vsel %vm546, 1, 0
      %v611 = vsel %vm547, 1, 0
      %v612 = vsel %vm548, 1, 0
      %v613 = vsel %vm549, 1, 0
      %v614 = vsel %vm550, 1, 0
      %v615 = vsel %vm551, 1, 0
      %v616 = vsel %vm552, 1, 0
      %v617 = vsel %vm553, 1, 0
      %v618 = vsel %vm554, 1, 0
      %v619 = vsel %vm555, 1, 0
      %v620 = vsel %vm556, 1, 0
      %v621 = vsel %vm557, 1, 0
      %v622 = vsel %vm558, 1, 0
      %v623 = vsel %vm559, 1, 0
      %v624 = vsel %vm560, 1, 0
      %v625 = vsel %vm561, 1, 0
      %v626 = vsel %vm562, 1, 0
      %v627 = vcvt.s32.f32 %v563
      %v628 = vcvt.s32.f32 %v564
      %v629 = vcvt.s32.f32 %v565
      %v630 = vcvt.s32.f32 %v566
      %v631 = vcvt.s32.f32 %v567
      %v632 = vcvt.s32.f32 %v568
      %v633 = vcvt.s32.f32 %v569
      %v634 = vcvt.s32.f32 %v570
      %v635 = vcvt.s32.f32 %v571
      %v636 = vcvt.s32.f32 %v572
      %v637 = vcvt.s32.f32 %v573
      %v638 = vcvt.s32.f32 %v574
      %v639 = vcvt.s32.f32 %v575
      %v640 = vcvt.s32.f32 %v576
      %v641 = vcvt.s32.f32 %v577
      %v642 = vcvt.s32.f32 %v578
      %v643 = vcvt.s32.f32 %v579
      %v644 = vcvt.s32.f32 %v580
      %v645 = vcvt.s32.f32 %v581
      %v646 = vcvt.s32.f32 %v582
      %v647 = vcvt.s32.f32 %v583
      %v648 = vcvt.s32.f32 %v584
      %v649 = vcvt.s32.f32 %v585
      %v650 = vcvt.s32.f32 %v586
      %v651 = vcvt.s32.f32 %v587
      %v652 = vcvt.s32.f32 %v588
      %v653 = vcvt.s32.f32 %v589
      %v654 = vcvt.s32.f32 %v590
      %v655 = vcvt.s32.f32 %v591
      %v656 = vcvt.s32.f32 %v592
      %v657 = vcvt.s32.f32 %v593
      %v658 = vcvt.s32.f32 %v594
      %v659 = vcvt.s32.f32 %v595
      %v660 = vcvt.s32.f32 %v596
      %v661 = vcvt.s32.f32 %v597
      %v662 = vcvt.s32.f32 %v598
      %v663 = vcvt.s32.f32 %v599
      %v664 = vcvt.s32.f32 %v600
      %v665 = vcvt.s32.f32 %v601
      %v666 = vcvt.s32.f32 %v602
      %v667 = vcvt.s32.f32 %v603
      %v668 = vcvt.s32.f32 %v604
      %v669 = vcvt.s32.f32 %v605
      %v670 = vcvt.s32.f32 %v606
      %v671 = vcvt.s32.f32 %v607
      %v672 = vcvt.s32.f32 %v608
      %v673 = vcvt.s32.f32 %v609
      %v674 = vcvt.s32.f32 %v610
      %v675 = vcvt.s32.f32 %v611
      %v676 = vcvt.s32.f32 %v612
      %v677 = vcvt.s32.f32 %v613
      %v678 = vcvt.s32.f32 %v614
      %v679 = vcvt.s32.f32 %v615
      %v680 = vcvt.s32.f32 %v616
      %v681 = vcvt.s32.f32 %v617
      %v682 = vcvt.s32.f32 %v618
      %v683 = vcvt.s32.f32 %v619
      %v684 = vcvt.s32.f32 %v620
      %v685 = vcvt.s32.f32 %v621
      %v686 = vcvt.s32.f32 %v622
      %v687 = vcvt.s32.f32 %v623
      %v688 = vcvt.s32.f32 %v624
      %v689 = vcvt.s32.f32 %v625
      %v690 = vcvt.s32.f32 %v626
      %v691 = vpack.c.bf16 %v631, %v627
      %v692 = vpack.c.bf16 %v632, %v628
      %v693 = vpack.c.bf16 %v633, %v629
      %v694 = vpack.c.bf16 %v634, %v630
      %v695 = vpack.c.bf16 %v639, %v635
      %v696 = vpack.c.bf16 %v640, %v636
      %v697 = vpack.c.bf16 %v641, %v637
      %v698 = vpack.c.bf16 %v642, %v638
      %v699 = vpack.c.bf16 %v647, %v643
      %v700 = vpack.c.bf16 %v648, %v644
      %v701 = vpack.c.bf16 %v649, %v645
      %v702 = vpack.c.bf16 %v650, %v646
      %v703 = vpack.c.bf16 %v655, %v651
      %v704 = vpack.c.bf16 %v656, %v652
      %v705 = vpack.c.bf16 %v657, %v653
      %v706 = vpack.c.bf16 %v658, %v654
      %v707 = vpack.c.bf16 %v663, %v659
      %v708 = vpack.c.bf16 %v664, %v660
      %v709 = vpack.c.bf16 %v665, %v661
      %v710 = vpack.c.bf16 %v666, %v662
      %v711 = vpack.c.bf16 %v671, %v667
      %v712 = vpack.c.bf16 %v672, %v668
      %v713 = vpack.c.bf16 %v673, %v669
      %v714 = vpack.c.bf16 %v674, %v670
      %v715 = vpack.c.bf16 %v679, %v675
      %v716 = vpack.c.bf16 %v680, %v676
      %v717 = vpack.c.bf16 %v681, %v677
      %v718 = vpack.c.bf16 %v682, %v678
      %v719 = vpack.c.bf16 %v687, %v683
      %v720 = vpack.c.bf16 %v688, %v684
      %v721 = vpack.c.bf16 %v689, %v685
      %v722 = vpack.c.bf16 %v690, %v686
      %v723 = vld [vmem:[%s1] sm:$0xf]
      %v724 = vld [vmem:[%s1 + $0x4] sm:$0xf]
      %v725 = vld [vmem:[%s1 + $0x8] sm:$0xf]
      %v726 = vld [vmem:[%s1 + $0xc] sm:$0xf]
      %v727 = vld [vmem:[%s1 + $0x10] sm:$0xf]
      %v733 = vunpack.c.l.b16 %v723
      %v734 = vunpack.c.l.b16 %v724
      %v735 = vunpack.c.l.b16 %v725
      %v736 = vunpack.c.l.b16 %v726
      %v737 = vunpack.c.l.b16 %v727
      %v738 = vpack.c.b16 %v734, %v733
      %v739 = vpack.c.b16 %v736, %v735
      %v740 = vpack.c.b16 %v737, %v737
      %744 = vmatprep.subr.bf16.mxu0 %v452
      %745 = vmatpush1.bf16.msra.mxu0 %v451
      %746 = vmatprep.subr.bf16.mxu0 %v456
      %747 = vmatpush1.bf16.msra.mxu0 %v455
      %748 = vmatprep.subr.bf16.mxu0 %v460
      %749 = vmatpush1.bf16.msra.mxu0 %v459
      %750 = vmatprep.subr.bf16.mxu0 %v464
      %751 = vmatpush1.bf16.msra.mxu0 %v463
      %752 = vmatprep.subr.bf16.mxu0 %v468
      %753 = vmatpush1.bf16.msra.mxu0 %v467
      %754 = vmatprep.subr.bf16.mxu0 %v472
      %755 = vmatpush1.bf16.msra.mxu0 %v471
      %756 = vmatprep.subr.bf16.mxu0 %v476
      %757 = vmatpush1.bf16.msra.mxu0 %v475
      %758 = vmatprep.subr.bf16.mxu0 %v480
      %759 = vmatpush1.bf16.msra.mxu0 %v479
      %760 = vmatprep.subr.bf16.mxu0 0
      %761 = vmatpush1.bf16.msra.mxu0 0
      %762 = vmatprep.subr.bf16.mxu0 0
      %763 = vmatpush1.bf16.msra.mxu0 0
      %764 = vmatprep.subr.bf16.mxu0 0
      %765 = vmatpush1.bf16.msra.mxu0 0
      %766 = vmatprep.subr.bf16.mxu0 0
      %767 = vmatpush1.bf16.msra.mxu0 0
      %768 = vmatprep.subr.bf16.mxu0 0
      %769 = vmatpush1.bf16.msra.mxu0 0
      %770 = vmatprep.subr.bf16.mxu0 0
      %771 = vmatpush1.bf16.msra.mxu0 0
      %772 = vmatprep.subr.bf16.mxu0 0
      %773 = vmatpush1.bf16.msra.mxu0 0
      %774 = vmatprep.subr.bf16.mxu0 0
      %775 = vmatpush1.bf16.msra.mxu0 0
      %776 = vmatprep.mubr.bf16.mxu0 0
      %777 = vmatmul.mubr.bf16.gmra.mrb[0].mxu0 %v738
      %v778 = vpop.f32.mrb[0].mxu0
      %v779 = vadd.f32 0.0, %v778
      %v780 = vpop.f32.mrb[0].mxu0
      %v781 = vadd.f32 0.0, %v780
      %v782 = vpop.f32.mrb[0].mxu0
      %v783 = vadd.f32 0.0, %v782
      %v784 = vpop.f32.mrb[0].mxu0
      %v785 = vadd.f32 0.0, %v784
      %786 = vmatprep.mubr.bf16.mxu0 0
      %787 = vmatmul.mubr.bf16.gmra.mrb[0].mxu0 %v739
      %v788 = vpop.f32.mrb[0].mxu0
      %v789 = vadd.f32 0.0, %v788
      %v790 = vpop.f32.mrb[0].mxu0
      %v791 = vadd.f32 0.0, %v790
      %v792 = vpop.f32.mrb[0].mxu0
      %v793 = vadd.f32 0.0, %v792
      %v794 = vpop.f32.mrb[0].mxu0
      %v795 = vadd.f32 0.0, %v794
      %796 = vmatprep.mubr.bf16.mxu0 0
      %797 = vmatmul.mubr.bf16.gmra.mrb[0].mxu0 %v740
      %v798 = vpop.f32.mrb[0].mxu0
      %v799 = vadd.f32 0.0, %v798
      %v800 = vpop.f32.mrb[0].mxu0
      %v801 = vadd.f32 0.0, %v800
      %v802 = vpop.f32.mrb[0].mxu0
      %v803 = vpop.f32.mrb[0].mxu0
      %804 = vdwg.mxu0
      %805 = vmatprep.subr.bf16.mxu0 %v454
      %806 = vmatpush1.bf16.msra.mxu0 %v453
      %807 = vmatprep.subr.bf16.mxu0 %v458
      %808 = vmatpush1.bf16.msra.mxu0 %v457
      %809 = vmatprep.subr.bf16.mxu0 %v462
      %810 = vmatpush1.bf16.msra.mxu0 %v461
      %811 = vmatprep.subr.bf16.mxu0 %v466
      %812 = vmatpush1.bf16.msra.mxu0 %v465
      %813 = vmatprep.subr.bf16.mxu0 %v470
      %814 = vmatpush1.bf16.msra.mxu0 %v469
      %815 = vmatprep.subr.bf16.mxu0 %v474
      %816 = vmatpush1.bf16.msra.mxu0 %v473
      %817 = vmatprep.subr.bf16.mxu0 %v478
      %818 = vmatpush1.bf16.msra.mxu0 %v477
      %819 = vmatprep.subr.bf16.mxu0 %v482
      %820 = vmatpush1.bf16.msra.mxu0 %v481
      %821 = vmatprep.subr.bf16.mxu0 0
      %822 = vmatpush1.bf16.msra.mxu0 0
      %823 = vmatprep.subr.bf16.mxu0 0
      %824 = vmatpush1.bf16.msra.mxu0 0
      %825 = vmatprep.subr.bf16.mxu0 0
      %826 = vmatpush1.bf16.msra.mxu0 0
      %827 = vmatprep.subr.bf16.mxu0 0
      %828 = vmatpush1.bf16.msra.mxu0 0
      %829 = vmatprep.subr.bf16.mxu0 0
      %830 = vmatpush1.bf16.msra.mxu0 0
      %831 = vmatprep.subr.bf16.mxu0 0
      %832 = vmatpush1.bf16.msra.mxu0 0
      %833 = vmatprep.subr.bf16.mxu0 0
      %834 = vmatpush1.bf16.msra.mxu0 0
      %835 = vmatprep.subr.bf16.mxu0 0
      %836 = vmatpush1.bf16.msra.mxu0 0
      %837 = vmatprep.mubr.bf16.mxu0 0
      %838 = vmatmul.mubr.bf16.gmra.mrb[0].mxu0 %v738
      %v839 = vpop.f32.mrb[0].mxu0
      %v840 = vadd.f32 0.0, %v839
      %v841 = vpop.f32.mrb[0].mxu0
      %v842 = vadd.f32 0.0, %v841
      %v843 = vpop.f32.mrb[0].mxu0
      %v844 = vadd.f32 0.0, %v843
      %v845 = vpop.f32.mrb[0].mxu0
      %v846 = vadd.f32 0.0, %v845
      %847 = vmatprep.mubr.bf16.mxu0 0
      %848 = vmatmul.mubr.bf16.gmra.mrb[0].mxu0 %v739
      %v849 = vpop.f32.mrb[0].mxu0
      %v850 = vadd.f32 0.0, %v849
      %v851 = vpop.f32.mrb[0].mxu0
      %v852 = vadd.f32 0.0, %v851
      %v853 = vpop.f32.mrb[0].mxu0
      %v854 = vadd.f32 0.0, %v853
      %v855 = vpop.f32.mrb[0].mxu0
      %v856 = vadd.f32 0.0, %v855
      %857 = vmatprep.mubr.bf16.mxu0 0
      %858 = vmatmul.mubr.bf16.gmra.mrb[0].mxu0 %v740
      %v859 = vpop.f32.mrb[0].mxu0
      %v860 = vadd.f32 0.0, %v859
      %v861 = vpop.f32.mrb[0].mxu0
      %v862 = vadd.f32 0.0, %v861
      %v863 = vpop.f32.mrb[0].mxu0
      %v864 = vpop.f32.mrb[0].mxu0
      %865 = vdwg.mxu0
      %866 = vmatprep.subr.bf16.mxu0 %v692
      %867 = vmatpush1.bf16.msra.mxu0 %v691
      %868 = vmatprep.subr.bf16.mxu0 %v696
      %869 = vmatpush1.bf16.msra.mxu0 %v695
      %870 = vmatprep.subr.bf16.mxu0 %v700
      %871 = vmatpush1.bf16.msra.mxu0 %v699
      %872 = vmatprep.subr.bf16.mxu0 %v704
      %873 = vmatpush1.bf16.msra.mxu0 %v703
      %874 = vmatprep.subr.bf16.mxu0 %v708
      %875 = vmatpush1.bf16.msra.mxu0 %v707
      %876 = vmatprep.subr.bf16.mxu0 %v712
      %877 = vmatpush1.bf16.msra.mxu0 %v711
      %878 = vmatprep.subr.bf16.mxu0 %v716
      %879 = vmatpush1.bf16.msra.mxu0 %v715
      %880 = vmatprep.subr.bf16.mxu0 %v720
      %881 = vmatpush1.bf16.msra.mxu0 %v719
      %882 = vmatprep.subr.bf16.mxu0 0
      %883 = vmatpush1.bf16.msra.mxu0 0
      %884 = vmatprep.subr.bf16.mxu0 0
      %885 = vmatpush1.bf16.msra.mxu0 0
      %886 = vmatprep.subr.bf16.mxu0 0
      %887 = vmatpush1.bf16.msra.mxu0 0
      %888 = vmatprep.subr.bf16.mxu0 0
      %889 = vmatpush1.bf16.msra.mxu0 0
      %890 = vmatprep.subr.bf16.mxu0 0
      %891 = vmatpush1.bf16.msra.mxu0 0
      %892 = vmatprep.subr.bf16.mxu0 0
      %893 = vmatpush1.bf16.msra.mxu0 0
      %894 = vmatprep.subr.bf16.mxu0 0
      %895 = vmatpush1.bf16.msra.mxu0 0
      %896 = vmatprep.subr.bf16.mxu0 0
      %897 = vmatpush1.bf16.msra.mxu0 0
      %898 = vmatprep.mubr.bf16.mxu0 0
      %899 = vmatmul.mubr.bf16.gmra.mrb[0].mxu0 %v738
      %v900 = vpop.f32.mrb[0].mxu0
      %v901 = vadd.f32 0.0, %v900
      %v902 = vpop.f32.mrb[0].mxu0
      %v903 = vadd.f32 0.0, %v902
      %v904 = vpop.f32.mrb[0].mxu0
      %v905 = vadd.f32 0.0, %v904
      %v906 = vpop.f32.mrb[0].mxu0
      %v907 = vadd.f32 0.0, %v906
      %908 = vmatprep.mubr.bf16.mxu0 0
      %909 = vmatmul.mubr.bf16.gmra.mrb[0].mxu0 %v739
      %v910 = vpop.f32.mrb[0].mxu0
      %v911 = vadd.f32 0.0, %v910
      %v912 = vpop.f32.mrb[0].mxu0
      %v913 = vadd.f32 0.0, %v912
      %v914 = vpop.f32.mrb[0].mxu0
      %v915 = vadd.f32 0.0, %v914
      %v916 = vpop.f32.mrb[0].mxu0
      %v917 = vadd.f32 0.0, %v916
      %918 = vmatprep.mubr.bf16.mxu0 0
      %919 = vmatmul.mubr.bf16.gmra.mrb[0].mxu0 %v740
      %v920 = vpop.f32.mrb[0].mxu0
      %v921 = vadd.f32 0.0, %v920
      %v922 = vpop.f32.mrb[0].mxu0
      %v923 = vadd.f32 0.0, %v922
      %v924 = vpop.f32.mrb[0].mxu0
      %v925 = vpop.f32.mrb[0].mxu0
      %926 = vdwg.mxu0
      %927 = vmatprep.subr.bf16.mxu0 %v694
      %928 = vmatpush1.bf16.msra.mxu0 %v693
      %929 = vmatprep.subr.bf16.mxu0 %v698
      %930 = vmatpush1.bf16.msra.mxu0 %v697
      %931 = vmatprep.subr.bf16.mxu0 %v702
      %932 = vmatpush1.bf16.msra.mxu0 %v701
      %933 = vmatprep.subr.bf16.mxu0 %v706
      %934 = vmatpush1.bf16.msra.mxu0 %v705
      %935 = vmatprep.subr.bf16.mxu0 %v710
      %936 = vmatpush1.bf16.msra.mxu0 %v709
      %937 = vmatprep.subr.bf16.mxu0 %v714
      %938 = vmatpush1.bf16.msra.mxu0 %v713
      %939 = vmatprep.subr.bf16.mxu0 %v718
      %940 = vmatpush1.bf16.msra.mxu0 %v717
      %941 = vmatprep.subr.bf16.mxu0 %v722
      %942 = vmatpush1.bf16.msra.mxu0 %v721
      %943 = vmatprep.subr.bf16.mxu0 0
      %944 = vmatpush1.bf16.msra.mxu0 0
      %945 = vmatprep.subr.bf16.mxu0 0
      %946 = vmatpush1.bf16.msra.mxu0 0
      %947 = vmatprep.subr.bf16.mxu0 0
      %948 = vmatpush1.bf16.msra.mxu0 0
      %949 = vmatprep.subr.bf16.mxu0 0
      %950 = vmatpush1.bf16.msra.mxu0 0
      %951 = vmatprep.subr.bf16.mxu0 0
      %952 = vmatpush1.bf16.msra.mxu0 0
      %953 = vmatprep.subr.bf16.mxu0 0
      %954 = vmatpush1.bf16.msra.mxu0 0
      %955 = vmatprep.subr.bf16.mxu0 0
      %956 = vmatpush1.bf16.msra.mxu0 0
      %957 = vmatprep.subr.bf16.mxu0 0
      %958 = vmatpush1.bf16.msra.mxu0 0
      %959 = vmatprep.mubr.bf16.mxu0 0
      %960 = vmatmul.mubr.bf16.gmra.mrb[0].mxu0 %v738
      %v961 = vpop.f32.mrb[0].mxu0
      %v962 = vadd.f32 0.0, %v961
      %v963 = vpop.f32.mrb[0].mxu0
      %v964 = vadd.f32 0.0, %v963
      %v965 = vpop.f32.mrb[0].mxu0
      %v966 = vadd.f32 0.0, %v965
      %v967 = vpop.f32.mrb[0].mxu0
      %v968 = vadd.f32 0.0, %v967
      %969 = vmatprep.mubr.bf16.mxu0 0
      %970 = vmatmul.mubr.bf16.gmra.mrb[0].mxu0 %v739
      %v971 = vpop.f32.mrb[0].mxu0
      %v972 = vadd.f32 0.0, %v971
      %v973 = vpop.f32.mrb[0].mxu0
      %v974 = vadd.f32 0.0, %v973
      %v975 = vpop.f32.mrb[0].mxu0
      %v976 = vadd.f32 0.0, %v975
      %v977 = vpop.f32.mrb[0].mxu0
      %v978 = vadd.f32 0.0, %v977
      %979 = vmatprep.mubr.bf16.mxu0 0
      %980 = vmatmul.mubr.bf16.gmra.mrb[0].mxu0 %v740
      %v981 = vpop.f32.mrb[0].mxu0
      %v982 = vadd.f32 0.0, %v981
      %v983 = vpop.f32.mrb[0].mxu0
      %v984 = vadd.f32 0.0, %v983
      %v985 = vpop.f32.mrb[0].mxu0
      %v986 = vpop.f32.mrb[0].mxu0
      %987 = vdwg.mxu0
      %v988 = vsub.f32 %v799, %v921
      %v989 = vsub.f32 %v801, %v923
      %v990 = vsub.f32 %v860, %v982
      %v991 = vsub.f32 %v862, %v984
      %v992 = vmul.f32 %v988, %v988
      %v993 = vmul.f32 %v989, %v989
      %v994 = vmul.f32 %v990, %v990
      %v995 = vmul.f32 %v991, %v991
      %v996 = vrot.slane %v992, 4
      %v997 = vadd.f32 %v992, %v996
      %v998 = vrot.slane %v997, 2
      %v999 = vadd.f32 %v997, %v998
      %v1000 = vrot.slane %v999, 1
      %v1001 = vadd.f32 %v999, %v1000
      %v1002 = vrot.slane %v993, 4
      %v1003 = vadd.f32 %v993, %v1002
      %v1004 = vrot.slane %v1003, 2
      %v1005 = vadd.f32 %v1003, %v1004
      %v1006 = vrot.slane %v1005, 1
      %v1007 = vadd.f32 %v1005, %v1006
      %v1008 = vrot.slane %v994, 4
      %v1009 = vadd.f32 %v994, %v1008
      %v1010 = vrot.slane %v1009, 2
      %v1011 = vadd.f32 %v1009, %v1010
      %v1012 = vrot.slane %v1011, 1
      %v1013 = vadd.f32 %v1011, %v1012
      %v1014 = vrot.slane %v995, 4
      %v1015 = vadd.f32 %v995, %v1014
      %v1016 = vrot.slane %v1015, 2
      %v1017 = vadd.f32 %v1015, %v1016
      %v1018 = vrot.slane %v1017, 1
      %v1019 = vadd.f32 %v1017, %v1018
      %v1020 = vrsqrt.pop %v1001
      %v1021 = vmul.f32 %v1001, %v1020
      %vm1022 = vcmp.eq.f32.partialorder %v1001, inf
      %v1023 = vsel %vm1022, %v1001, %v1021
      %vm1024 = vcmp.eq.f32.partialorder %v1001, 0.0
      %v1025 = vand.u32 %v1001, 2147483648
      %v1026 = vsel %vm1024, %v1025, %v1023
      %v1027 = vrsqrt.pop %v1007
      %v1028 = vmul.f32 %v1007, %v1027
      %vm1029 = vcmp.eq.f32.partialorder %v1007, inf
      %v1030 = vsel %vm1029, %v1007, %v1028
      %vm1031 = vcmp.eq.f32.partialorder %v1007, 0.0
      %v1032 = vand.u32 %v1007, 2147483648
      %v1033 = vsel %vm1031, %v1032, %v1030
      %v1034 = vrsqrt.pop %v1013
      %v1035 = vmul.f32 %v1013, %v1034
      %vm1036 = vcmp.eq.f32.partialorder %v1013, inf
      %v1037 = vsel %vm1036, %v1013, %v1035
      %vm1038 = vcmp.eq.f32.partialorder %v1013, 0.0
      %v1039 = vand.u32 %v1013, 2147483648
      %v1040 = vsel %vm1038, %v1039, %v1037
      %v1041 = vrsqrt.pop %v1019
      %v1042 = vmul.f32 %v1019, %v1041
      %vm1043 = vcmp.eq.f32.partialorder %v1019, inf
      %v1044 = vsel %vm1043, %v1019, %v1042
      %vm1045 = vcmp.eq.f32.partialorder %v1019, 0.0
      %v1046 = vand.u32 %v1019, 2147483648
      %v1047 = vsel %vm1045, %v1046, %v1044
      %v1048 = vadd.f32 %v1026, 1e-08
      %v1049 = vadd.f32 %v1033, 1e-08
      %v1050 = vadd.f32 %v1040, 1e-08
      %v1051 = vadd.f32 %v1047, 1e-08
      %v1052 = vrcp.pop %v1048
      %v1053 = vrcp.pop %v1049
      %v1054 = vrcp.pop %v1050
      %v1055 = vrcp.pop %v1051
      %v1056 = vmul.f32 %v988, %v1052
      %v1057 = vmul.f32 %v989, %v1053
      %v1058 = vmul.f32 %v990, %v1054
      %v1059 = vmul.f32 %v991, %v1055
      %v1060 = vld [vmem:[%s3] sm:$0xff]
      %v1061 = vld [vmem:[%s3 + $0x8] sm:$0xff]
      %v1062 = vld [vmem:[%s3 + $0x10] sm:$0xff]
      %v1063 = vld [vmem:[%s3 + $0x18] sm:$0xff]
      %v1064 = vld [vmem:[%s2] sm:$0xff]
      %v1065 = vld [vmem:[%s2 + $0x8] sm:$0xff]
      %v1066 = vld [vmem:[%s2 + $0x10] sm:$0xff]
      %v1067 = vld [vmem:[%s2 + $0x18] sm:$0xff]
      %s1068 = scalar_lea.vmem %s2, 32
      %v1069 = vld [vmem:[%s1068] sm:$0xff]
      %v1070 = vld [vmem:[%s1068 + $0x8] sm:$0xff]
      %v1071 = vld [vmem:[%s1068 + $0x10] sm:$0xff]
      %v1072 = vld [vmem:[%s1068 + $0x18] sm:$0xff]
      %vm1073 = vcmask 261120
      %v1075 = vsel %vm1073, %v1069, 0
      %v1078 = vsel %vm1073, %v1070, 0
      %v1081 = vsel %vm1073, %v1071, 0
      %v1084 = vsel %vm1073, %v1072, 0
      %1086 = vmatprep.subr.mxu0 %v903
      %1087 = vmatpush1.msra.mxu0 %v901
      %1088 = vmatprep.subr.mxu0 %v907
      %1089 = vmatpush1.msra.mxu0 %v905
      %1090 = vmatprep.subr.mxu0 %v913
      %1091 = vmatpush1.msra.mxu0 %v911
      %1092 = vmatprep.subr.mxu0 %v917
      %1093 = vmatpush1.msra.mxu0 %v915
      %1094 = vmatprep.subr.mxu0 0.0
      %1095 = vmatpush1.msra.mxu0 0.0
      %1096 = vmatprep.subr.mxu0 0.0
      %1097 = vmatpush1.msra.mxu0 0.0
      %1098 = vmatprep.subr.mxu0 0.0
      %1099 = vmatpush1.msra.mxu0 0.0
      %1100 = vmatprep.subr.mxu0 0.0
      %1101 = vmatpush1.msra.mxu0 0.0
      %1102 = vmatprep.subr.mxu0 0.0
      %1103 = vmatpush1.msra.mxu0 0.0
      %1104 = vmatprep.subr.mxu0 0.0
      %1105 = vmatpush1.msra.mxu0 0.0
      %1106 = vmatprep.subr.mxu0 0.0
      %1107 = vmatpush1.msra.mxu0 0.0
      %1108 = vmatprep.subr.mxu0 0.0
      %1109 = vmatpush1.msra.mxu0 0.0
      %1110 = vmatprep.subr.mxu0 0.0
      %1111 = vmatpush1.msra.mxu0 0.0
      %1112 = vmatprep.subr.mxu0 0.0
      %1113 = vmatpush1.msra.mxu0 0.0
      %1114 = vmatprep.subr.mxu0 0.0
      %1115 = vmatpush1.msra.mxu0 0.0
      %1116 = vmatprep.subr.mxu0 0.0
      %1117 = vmatpush1.msra.mxu0 0.0
      %1118 = vmatprep.subr.mxu0 0.0
      %1119 = vmatpush1.msra.mxu0 0.0
      %1120 = vmatprep.subr.mxu0 0.0
      %1121 = vmatpush1.msra.mxu0 0.0
      %1122 = vmatprep.subr.mxu0 0.0
      %1123 = vmatpush1.msra.mxu0 0.0
      %1124 = vmatprep.subr.mxu0 0.0
      %1125 = vmatpush1.msra.mxu0 0.0
      %1126 = vmatprep.subr.mxu0 0.0
      %1127 = vmatpush1.msra.mxu0 0.0
      %1128 = vmatprep.subr.mxu0 0.0
      %1129 = vmatpush1.msra.mxu0 0.0
      %1130 = vmatprep.subr.mxu0 0.0
      %1131 = vmatpush1.msra.mxu0 0.0
      %1132 = vmatprep.subr.mxu0 0.0
      %1133 = vmatpush1.msra.mxu0 0.0
      %1134 = vmatprep.subr.mxu0 0.0
      %1135 = vmatpush1.msra.mxu0 0.0
      %1136 = vmatprep.subr.mxu0 0.0
      %1137 = vmatpush1.msra.mxu0 0.0
      %1138 = vmatprep.subr.mxu0 0.0
      %1139 = vmatpush1.msra.mxu0 0.0
      %1140 = vmatprep.subr.mxu0 0.0
      %1141 = vmatpush1.msra.mxu0 0.0
      %1142 = vmatprep.subr.mxu0 0.0
      %1143 = vmatpush1.msra.mxu0 0.0
      %1144 = vmatprep.subr.mxu0 0.0
      %1145 = vmatpush1.msra.mxu0 0.0
      %1146 = vmatprep.subr.mxu0 0.0
      %1147 = vmatpush1.msra.mxu0 0.0
      %1148 = vmatprep.subr.mxu0 0.0
      %1149 = vmatpush1.msra.mxu0 0.0
      %1150 = vmatprep.mubr.f32.mxu0 0.0
      %1151 = vmatmul.mubr.f32.gmra.mrb[0].mxu0 %v1075
      %v1152 = vpop.f32.mrb[0].mxu0
      %v1153 = vadd.f32 0.0, %v1152
      %v1154 = vpop.f32.mrb[0].mxu0
      %v1155 = vadd.f32 0.0, %v1154
      %1156 = vmatprep.mubr.f32.mxu0 0.0
      %1157 = vmatmul.mubr.f32.gmra.mrb[0].mxu0 %v1078
      %v1158 = vpop.f32.mrb[0].mxu0
      %v1159 = vadd.f32 0.0, %v1158
      %v1160 = vpop.f32.mrb[0].mxu0
      %v1161 = vadd.f32 0.0, %v1160
      %1162 = vmatprep.mubr.f32.mxu0 0.0
      %1163 = vmatmul.mubr.f32.gmra.mrb[0].mxu0 %v1081
      %v1164 = vpop.f32.mrb[0].mxu0
      %v1165 = vadd.f32 0.0, %v1164
      %v1166 = vpop.f32.mrb[0].mxu0
      %v1167 = vadd.f32 0.0, %v1166
      %1168 = vmatprep.mubr.f32.mxu0 0.0
      %1169 = vmatmul.mubr.f32.gmra.mrb[0].mxu0 %v1084
      %v1170 = vpop.f32.mrb[0].mxu0
      %v1171 = vadd.f32 0.0, %v1170
      %v1172 = vpop.f32.mrb[0].mxu0
      %v1173 = vadd.f32 0.0, %v1172
      %1174 = vdwg.mxu0
      %1175 = vmatprep.subr.mxu0 %v964
      %1176 = vmatpush1.msra.mxu0 %v962
      %1177 = vmatprep.subr.mxu0 %v968
      %1178 = vmatpush1.msra.mxu0 %v966
      %1179 = vmatprep.subr.mxu0 %v974
      %1180 = vmatpush1.msra.mxu0 %v972
      %1181 = vmatprep.subr.mxu0 %v978
      %1182 = vmatpush1.msra.mxu0 %v976
      %1183 = vmatprep.subr.mxu0 0.0
      %1184 = vmatpush1.msra.mxu0 0.0
      %1185 = vmatprep.subr.mxu0 0.0
      %1186 = vmatpush1.msra.mxu0 0.0
      %1187 = vmatprep.subr.mxu0 0.0
      %1188 = vmatpush1.msra.mxu0 0.0
      %1189 = vmatprep.subr.mxu0 0.0
      %1190 = vmatpush1.msra.mxu0 0.0
      %1191 = vmatprep.subr.mxu0 0.0
      %1192 = vmatpush1.msra.mxu0 0.0
      %1193 = vmatprep.subr.mxu0 0.0
      %1194 = vmatpush1.msra.mxu0 0.0
      %1195 = vmatprep.subr.mxu0 0.0
      %1196 = vmatpush1.msra.mxu0 0.0
      %1197 = vmatprep.subr.mxu0 0.0
      %1198 = vmatpush1.msra.mxu0 0.0
      %1199 = vmatprep.subr.mxu0 0.0
      %1200 = vmatpush1.msra.mxu0 0.0
      %1201 = vmatprep.subr.mxu0 0.0
      %1202 = vmatpush1.msra.mxu0 0.0
      %1203 = vmatprep.subr.mxu0 0.0
      %1204 = vmatpush1.msra.mxu0 0.0
      %1205 = vmatprep.subr.mxu0 0.0
      %1206 = vmatpush1.msra.mxu0 0.0
      %1207 = vmatprep.subr.mxu0 0.0
      %1208 = vmatpush1.msra.mxu0 0.0
      %1209 = vmatprep.subr.mxu0 0.0
      %1210 = vmatpush1.msra.mxu0 0.0
      %1211 = vmatprep.subr.mxu0 0.0
      %1212 = vmatpush1.msra.mxu0 0.0
      %1213 = vmatprep.subr.mxu0 0.0
      %1214 = vmatpush1.msra.mxu0 0.0
      %1215 = vmatprep.subr.mxu0 0.0
      %1216 = vmatpush1.msra.mxu0 0.0
      %1217 = vmatprep.subr.mxu0 0.0
      %1218 = vmatpush1.msra.mxu0 0.0
      %1219 = vmatprep.subr.mxu0 0.0
      %1220 = vmatpush1.msra.mxu0 0.0
      %1221 = vmatprep.subr.mxu0 0.0
      %1222 = vmatpush1.msra.mxu0 0.0
      %1223 = vmatprep.subr.mxu0 0.0
      %1224 = vmatpush1.msra.mxu0 0.0
      %1225 = vmatprep.subr.mxu0 0.0
      %1226 = vmatpush1.msra.mxu0 0.0
      %1227 = vmatprep.subr.mxu0 0.0
      %1228 = vmatpush1.msra.mxu0 0.0
      %1229 = vmatprep.subr.mxu0 0.0
      %1230 = vmatpush1.msra.mxu0 0.0
      %1231 = vmatprep.subr.mxu0 0.0
      %1232 = vmatpush1.msra.mxu0 0.0
      %1233 = vmatprep.subr.mxu0 0.0
      %1234 = vmatpush1.msra.mxu0 0.0
      %1235 = vmatprep.subr.mxu0 0.0
      %1236 = vmatpush1.msra.mxu0 0.0
      %1237 = vmatprep.subr.mxu0 0.0
      %1238 = vmatpush1.msra.mxu0 0.0
      %1239 = vmatprep.mubr.f32.mxu0 0.0
      %1240 = vmatmul.mubr.f32.gmra.mrb[0].mxu0 %v1075
      %v1241 = vpop.f32.mrb[0].mxu0
      %v1242 = vadd.f32 0.0, %v1241
      %v1243 = vpop.f32.mrb[0].mxu0
      %v1244 = vadd.f32 0.0, %v1243
      %1245 = vmatprep.mubr.f32.mxu0 0.0
      %1246 = vmatmul.mubr.f32.gmra.mrb[0].mxu0 %v1078
      %v1247 = vpop.f32.mrb[0].mxu0
      %v1248 = vadd.f32 0.0, %v1247
      %v1249 = vpop.f32.mrb[0].mxu0
      %v1250 = vadd.f32 0.0, %v1249
      %1251 = vmatprep.mubr.f32.mxu0 0.0
      %1252 = vmatmul.mubr.f32.gmra.mrb[0].mxu0 %v1081
      %v1253 = vpop.f32.mrb[0].mxu0
      %v1254 = vadd.f32 0.0, %v1253
      %v1255 = vpop.f32.mrb[0].mxu0
      %v1256 = vadd.f32 0.0, %v1255
      %1257 = vmatprep.mubr.f32.mxu0 0.0
      %1258 = vmatmul.mubr.f32.gmra.mrb[0].mxu0 %v1084
      %v1259 = vpop.f32.mrb[0].mxu0
      %v1260 = vadd.f32 0.0, %v1259
      %v1261 = vpop.f32.mrb[0].mxu0
      %v1262 = vadd.f32 0.0, %v1261
      %1263 = vdwg.mxu0
      %v1265 = vsel %vm1073, %v1064, 0
      %v1268 = vsel %vm1073, %v1065, 0
      %v1271 = vsel %vm1073, %v1066, 0
      %v1274 = vsel %vm1073, %v1067, 0
      %1276 = vmatprep.subr.mxu0 %v781
      %1277 = vmatpush1.msra.mxu0 %v779
      %1278 = vmatprep.subr.mxu0 %v785
      %1279 = vmatpush1.msra.mxu0 %v783
      %1280 = vmatprep.subr.mxu0 %v791
      %1281 = vmatpush1.msra.mxu0 %v789
      %1282 = vmatprep.subr.mxu0 %v795
      %1283 = vmatpush1.msra.mxu0 %v793
      %1284 = vmatprep.subr.mxu0 0.0
      %1285 = vmatpush1.msra.mxu0 0.0
      %1286 = vmatprep.subr.mxu0 0.0
      %1287 = vmatpush1.msra.mxu0 0.0
      %1288 = vmatprep.subr.mxu0 0.0
      %1289 = vmatpush1.msra.mxu0 0.0
      %1290 = vmatprep.subr.mxu0 0.0
      %1291 = vmatpush1.msra.mxu0 0.0
      %1292 = vmatprep.subr.mxu0 0.0
      %1293 = vmatpush1.msra.mxu0 0.0
      %1294 = vmatprep.subr.mxu0 0.0
      %1295 = vmatpush1.msra.mxu0 0.0
      %1296 = vmatprep.subr.mxu0 0.0
      %1297 = vmatpush1.msra.mxu0 0.0
      %1298 = vmatprep.subr.mxu0 0.0
      %1299 = vmatpush1.msra.mxu0 0.0
      %1300 = vmatprep.subr.mxu0 0.0
      %1301 = vmatpush1.msra.mxu0 0.0
      %1302 = vmatprep.subr.mxu0 0.0
      %1303 = vmatpush1.msra.mxu0 0.0
      %1304 = vmatprep.subr.mxu0 0.0
      %1305 = vmatpush1.msra.mxu0 0.0
      %1306 = vmatprep.subr.mxu0 0.0
      %1307 = vmatpush1.msra.mxu0 0.0
      %1308 = vmatprep.subr.mxu0 0.0
      %1309 = vmatpush1.msra.mxu0 0.0
      %1310 = vmatprep.subr.mxu0 0.0
      %1311 = vmatpush1.msra.mxu0 0.0
      %1312 = vmatprep.subr.mxu0 0.0
      %1313 = vmatpush1.msra.mxu0 0.0
      %1314 = vmatprep.subr.mxu0 0.0
      %1315 = vmatpush1.msra.mxu0 0.0
      %1316 = vmatprep.subr.mxu0 0.0
      %1317 = vmatpush1.msra.mxu0 0.0
      %1318 = vmatprep.subr.mxu0 0.0
      %1319 = vmatpush1.msra.mxu0 0.0
      %1320 = vmatprep.subr.mxu0 0.0
      %1321 = vmatpush1.msra.mxu0 0.0
      %1322 = vmatprep.subr.mxu0 0.0
      %1323 = vmatpush1.msra.mxu0 0.0
      %1324 = vmatprep.subr.mxu0 0.0
      %1325 = vmatpush1.msra.mxu0 0.0
      %1326 = vmatprep.subr.mxu0 0.0
      %1327 = vmatpush1.msra.mxu0 0.0
      %1328 = vmatprep.subr.mxu0 0.0
      %1329 = vmatpush1.msra.mxu0 0.0
      %1330 = vmatprep.subr.mxu0 0.0
      %1331 = vmatpush1.msra.mxu0 0.0
      %1332 = vmatprep.subr.mxu0 0.0
      %1333 = vmatpush1.msra.mxu0 0.0
      %1334 = vmatprep.subr.mxu0 0.0
      %1335 = vmatpush1.msra.mxu0 0.0
      %1336 = vmatprep.subr.mxu0 0.0
      %1337 = vmatpush1.msra.mxu0 0.0
      %1338 = vmatprep.subr.mxu0 0.0
      %1339 = vmatpush1.msra.mxu0 0.0
      %1340 = vmatprep.mubr.f32.mxu0 0.0
      %1341 = vmatmul.mubr.f32.gmra.mrb[0].mxu0 %v1265
      %v1342 = vpop.f32.mrb[0].mxu0
      %v1343 = vadd.f32 %v1153, %v1342
      %v1344 = vpop.f32.mrb[0].mxu0
      %v1345 = vadd.f32 %v1155, %v1344
      %1346 = vmatprep.mubr.f32.mxu0 0.0
      %1347 = vmatmul.mubr.f32.gmra.mrb[0].mxu0 %v1268
      %v1348 = vpop.f32.mrb[0].mxu0
      %v1349 = vadd.f32 %v1159, %v1348
      %v1350 = vpop.f32.mrb[0].mxu0
      %v1351 = vadd.f32 %v1161, %v1350
      %1352 = vmatprep.mubr.f32.mxu0 0.0
      %1353 = vmatmul.mubr.f32.gmra.mrb[0].mxu0 %v1271
      %v1354 = vpop.f32.mrb[0].mxu0
      %v1355 = vadd.f32 %v1165, %v1354
      %v1356 = vpop.f32.mrb[0].mxu0
      %v1357 = vadd.f32 %v1167, %v1356
      %1358 = vmatprep.mubr.f32.mxu0 0.0
      %1359 = vmatmul.mubr.f32.gmra.mrb[0].mxu0 %v1274
      %v1360 = vpop.f32.mrb[0].mxu0
      %v1361 = vadd.f32 %v1171, %v1360
      %v1362 = vpop.f32.mrb[0].mxu0
      %v1363 = vadd.f32 %v1173, %v1362
      %1364 = vdwg.mxu0
      %1365 = vmatprep.subr.mxu0 %v842
      %1366 = vmatpush1.msra.mxu0 %v840
      %1367 = vmatprep.subr.mxu0 %v846
      %1368 = vmatpush1.msra.mxu0 %v844
      %1369 = vmatprep.subr.mxu0 %v852
      %1370 = vmatpush1.msra.mxu0 %v850
      %1371 = vmatprep.subr.mxu0 %v856
      %1372 = vmatpush1.msra.mxu0 %v854
      %1373 = vmatprep.subr.mxu0 0.0
      %1374 = vmatpush1.msra.mxu0 0.0
      %1375 = vmatprep.subr.mxu0 0.0
      %1376 = vmatpush1.msra.mxu0 0.0
      %1377 = vmatprep.subr.mxu0 0.0
      %1378 = vmatpush1.msra.mxu0 0.0
      %1379 = vmatprep.subr.mxu0 0.0
      %1380 = vmatpush1.msra.mxu0 0.0
      %1381 = vmatprep.subr.mxu0 0.0
      %1382 = vmatpush1.msra.mxu0 0.0
      %1383 = vmatprep.subr.mxu0 0.0
      %1384 = vmatpush1.msra.mxu0 0.0
      %1385 = vmatprep.subr.mxu0 0.0
      %1386 = vmatpush1.msra.mxu0 0.0
      %1387 = vmatprep.subr.mxu0 0.0
      %1388 = vmatpush1.msra.mxu0 0.0
      %1389 = vmatprep.subr.mxu0 0.0
      %1390 = vmatpush1.msra.mxu0 0.0
      %1391 = vmatprep.subr.mxu0 0.0
      %1392 = vmatpush1.msra.mxu0 0.0
      %1393 = vmatprep.subr.mxu0 0.0
      %1394 = vmatpush1.msra.mxu0 0.0
      %1395 = vmatprep.subr.mxu0 0.0
      %1396 = vmatpush1.msra.mxu0 0.0
      %1397 = vmatprep.subr.mxu0 0.0
      %1398 = vmatpush1.msra.mxu0 0.0
      %1399 = vmatprep.subr.mxu0 0.0
      %1400 = vmatpush1.msra.mxu0 0.0
      %1401 = vmatprep.subr.mxu0 0.0
      %1402 = vmatpush1.msra.mxu0 0.0
      %1403 = vmatprep.subr.mxu0 0.0
      %1404 = vmatpush1.msra.mxu0 0.0
      %1405 = vmatprep.subr.mxu0 0.0
      %1406 = vmatpush1.msra.mxu0 0.0
      %1407 = vmatprep.subr.mxu0 0.0
      %1408 = vmatpush1.msra.mxu0 0.0
      %1409 = vmatprep.subr.mxu0 0.0
      %1410 = vmatpush1.msra.mxu0 0.0
      %1411 = vmatprep.subr.mxu0 0.0
      %1412 = vmatpush1.msra.mxu0 0.0
      %1413 = vmatprep.subr.mxu0 0.0
      %1414 = vmatpush1.msra.mxu0 0.0
      %1415 = vmatprep.subr.mxu0 0.0
      %1416 = vmatpush1.msra.mxu0 0.0
      %1417 = vmatprep.subr.mxu0 0.0
      %1418 = vmatpush1.msra.mxu0 0.0
      %1419 = vmatprep.subr.mxu0 0.0
      %1420 = vmatpush1.msra.mxu0 0.0
      %1421 = vmatprep.subr.mxu0 0.0
      %1422 = vmatpush1.msra.mxu0 0.0
      %1423 = vmatprep.subr.mxu0 0.0
      %1424 = vmatpush1.msra.mxu0 0.0
      %1425 = vmatprep.subr.mxu0 0.0
      %1426 = vmatpush1.msra.mxu0 0.0
      %1427 = vmatprep.subr.mxu0 0.0
      %1428 = vmatpush1.msra.mxu0 0.0
      %1429 = vmatprep.mubr.f32.mxu0 0.0
      %1430 = vmatmul.mubr.f32.gmra.mrb[0].mxu0 %v1265
      %v1431 = vpop.f32.mrb[0].mxu0
      %v1432 = vadd.f32 %v1242, %v1431
      %v1433 = vpop.f32.mrb[0].mxu0
      %v1434 = vadd.f32 %v1244, %v1433
      %1435 = vmatprep.mubr.f32.mxu0 0.0
      %1436 = vmatmul.mubr.f32.gmra.mrb[0].mxu0 %v1268
      %v1437 = vpop.f32.mrb[0].mxu0
      %v1438 = vadd.f32 %v1248, %v1437
      %v1439 = vpop.f32.mrb[0].mxu0
      %v1440 = vadd.f32 %v1250, %v1439
      %1441 = vmatprep.mubr.f32.mxu0 0.0
      %1442 = vmatmul.mubr.f32.gmra.mrb[0].mxu0 %v1271
      %v1443 = vpop.f32.mrb[0].mxu0
      %v1444 = vadd.f32 %v1254, %v1443
      %v1445 = vpop.f32.mrb[0].mxu0
      %v1446 = vadd.f32 %v1256, %v1445
      %1447 = vmatprep.mubr.f32.mxu0 0.0
      %1448 = vmatmul.mubr.f32.gmra.mrb[0].mxu0 %v1274
      %v1449 = vpop.f32.mrb[0].mxu0
      %v1450 = vadd.f32 %v1260, %v1449
      %v1451 = vpop.f32.mrb[0].mxu0
      %v1452 = vadd.f32 %v1262, %v1451
      %1453 = vdwg.mxu0
      %1455 = vset.pattern.permute.xlu0 0
      %1456 = vperm.xlu0 %1455, %v1060
      %v1457 = vpop.permute.xlu0 %1456
      %1460 = vset.pattern.permute.xlu0 0
      %1461 = vperm.xlu0 %1460, %v1061
      %v1462 = vpop.permute.xlu0 %1461
      %1465 = vset.pattern.permute.xlu0 0
      %1466 = vperm.xlu0 %1465, %v1062
      %v1467 = vpop.permute.xlu0 %1466
      %1470 = vset.pattern.permute.xlu0 0
      %1471 = vperm.xlu0 %1470, %v1063
      %v1472 = vpop.permute.xlu0 %1471
      %v1474 = vmul.f32 %v1457, %v1001
      %v1475 = vmul.f32 %v1457, %v1007
      %v1476 = vmul.f32 %v1457, %v1013
      %v1477 = vmul.f32 %v1457, %v1019
      %v1478 = vmul.f32 %v1462, %v1001
      %v1479 = vmul.f32 %v1462, %v1007
      %v1480 = vmul.f32 %v1462, %v1013
      %v1481 = vmul.f32 %v1462, %v1019
      %v1482 = vmul.f32 %v1467, %v1001
      %v1483 = vmul.f32 %v1467, %v1007
      %v1484 = vmul.f32 %v1467, %v1013
      %v1485 = vmul.f32 %v1467, %v1019
      %v1486 = vmul.f32 %v1472, %v1001
      %v1487 = vmul.f32 %v1472, %v1007
      %v1488 = vmul.f32 %v1472, %v1013
      %v1489 = vmul.f32 %v1472, %v1019
      %v1490 = vadd.f32 %v1343, %v1474
      %v1491 = vadd.f32 %v1345, %v1475
      %v1492 = vadd.f32 %v1432, %v1476
      %v1493 = vadd.f32 %v1434, %v1477
      %v1494 = vadd.f32 %v1349, %v1478
      %v1495 = vadd.f32 %v1351, %v1479
      %v1496 = vadd.f32 %v1438, %v1480
      %v1497 = vadd.f32 %v1440, %v1481
      %v1498 = vadd.f32 %v1355, %v1482
      %v1499 = vadd.f32 %v1357, %v1483
      %v1500 = vadd.f32 %v1444, %v1484
      %v1501 = vadd.f32 %v1446, %v1485
      %v1502 = vadd.f32 %v1361, %v1486
      %v1503 = vadd.f32 %v1363, %v1487
      %v1504 = vadd.f32 %v1450, %v1488
      %v1505 = vadd.f32 %v1452, %v1489
      %1506 = vset.pattern.permute.xlu0 1
      %1507 = vperm.xlu0 %1506, %v1060
      %v1508 = vpop.permute.xlu0 %1507
      %1510 = vset.pattern.permute.xlu0 1
      %1511 = vperm.xlu0 %1510, %v1061
      %v1512 = vpop.permute.xlu0 %1511
      %1514 = vset.pattern.permute.xlu0 1
      %1515 = vperm.xlu0 %1514, %v1062
      %v1516 = vpop.permute.xlu0 %1515
      %1518 = vset.pattern.permute.xlu0 1
      %1519 = vperm.xlu0 %1518, %v1063
      %v1520 = vpop.permute.xlu0 %1519
      %v1522 = vadd.f32 %v1490, %v1508
      %v1523 = vadd.f32 %v1491, %v1508
      %v1524 = vadd.f32 %v1492, %v1508
      %v1525 = vadd.f32 %v1493, %v1508
      %v1526 = vadd.f32 %v1494, %v1512
      %v1527 = vadd.f32 %v1495, %v1512
      %v1528 = vadd.f32 %v1496, %v1512
      %v1529 = vadd.f32 %v1497, %v1512
      %v1530 = vadd.f32 %v1498, %v1516
      %v1531 = vadd.f32 %v1499, %v1516
      %v1532 = vadd.f32 %v1500, %v1516
      %v1533 = vadd.f32 %v1501, %v1516
      %v1534 = vadd.f32 %v1502, %v1520
      %v1535 = vadd.f32 %v1503, %v1520
      %v1536 = vadd.f32 %v1504, %v1520
      %v1537 = vadd.f32 %v1505, %v1520
      %v1538 = vxor.u32 %v1522, 2147483648
      %v1539 = vxor.u32 %v1523, 2147483648
      %v1540 = vxor.u32 %v1524, 2147483648
      %v1541 = vxor.u32 %v1525, 2147483648
      %v1542 = vxor.u32 %v1526, 2147483648
      %v1543 = vxor.u32 %v1527, 2147483648
      %v1544 = vxor.u32 %v1528, 2147483648
      %v1545 = vxor.u32 %v1529, 2147483648
      %v1546 = vxor.u32 %v1530, 2147483648
      %v1547 = vxor.u32 %v1531, 2147483648
      %v1548 = vxor.u32 %v1532, 2147483648
      %v1549 = vxor.u32 %v1533, 2147483648
      %v1550 = vxor.u32 %v1534, 2147483648
      %v1551 = vxor.u32 %v1535, 2147483648
      %v1552 = vxor.u32 %v1536, 2147483648
      %v1553 = vxor.u32 %v1537, 2147483648
      %v1554 = vmul.f32 %v1538, 1.442695
      %v1555 = vpow.pop %v1554
      %v1556 = vmul.f32 %v1539, 1.442695
      %v1557 = vpow.pop %v1556
      %v1558 = vmul.f32 %v1540, 1.442695
      %v1559 = vpow.pop %v1558
      %v1560 = vmul.f32 %v1541, 1.442695
      %v1561 = vpow.pop %v1560
      %v1562 = vmul.f32 %v1542, 1.442695
      %v1563 = vpow.pop %v1562
      %v1564 = vmul.f32 %v1543, 1.442695
      %v1565 = vpow.pop %v1564
      %v1566 = vmul.f32 %v1544, 1.442695
      %v1567 = vpow.pop %v1566
      %v1568 = vmul.f32 %v1545, 1.442695
      %v1569 = vpow.pop %v1568
      %v1570 = vmul.f32 %v1546, 1.442695
      %v1571 = vpow.pop %v1570
      %v1572 = vmul.f32 %v1547, 1.442695
      %v1573 = vpow.pop %v1572
      %v1574 = vmul.f32 %v1548, 1.442695
      %v1575 = vpow.pop %v1574
      %v1576 = vmul.f32 %v1549, 1.442695
      %v1577 = vpow.pop %v1576
      %v1578 = vmul.f32 %v1550, 1.442695
      %v1579 = vpow.pop %v1578
      %v1580 = vmul.f32 %v1551, 1.442695
      %v1581 = vpow.pop %v1580
      %v1582 = vmul.f32 %v1552, 1.442695
      %v1583 = vpow.pop %v1582
      %v1584 = vmul.f32 %v1553, 1.442695
      %v1585 = vpow.pop %v1584
      %v1586 = vadd.f32 %v1555, 1.0
      %v1587 = vadd.f32 %v1557, 1.0
      %v1588 = vadd.f32 %v1559, 1.0
      %v1589 = vadd.f32 %v1561, 1.0
      %v1590 = vadd.f32 %v1563, 1.0
      %v1591 = vadd.f32 %v1565, 1.0
      %v1592 = vadd.f32 %v1567, 1.0
      %v1593 = vadd.f32 %v1569, 1.0
      %v1594 = vadd.f32 %v1571, 1.0
      %v1595 = vadd.f32 %v1573, 1.0
      %v1596 = vadd.f32 %v1575, 1.0
      %v1597 = vadd.f32 %v1577, 1.0
      %v1598 = vadd.f32 %v1579, 1.0
      %v1599 = vadd.f32 %v1581, 1.0
      %v1600 = vadd.f32 %v1583, 1.0
      %v1601 = vadd.f32 %v1585, 1.0
      %v1602 = vrcp.pop %v1586
      %v1603 = vmul.f32 1.0, %v1602
      %v1604 = vrcp.pop %v1587
      %v1605 = vmul.f32 1.0, %v1604
      %v1606 = vrcp.pop %v1588
      %v1607 = vmul.f32 1.0, %v1606
      %v1608 = vrcp.pop %v1589
      %v1609 = vmul.f32 1.0, %v1608
      %v1610 = vrcp.pop %v1590
      %v1611 = vmul.f32 1.0, %v1610
      %v1612 = vrcp.pop %v1591
      %v1613 = vmul.f32 1.0, %v1612
      %v1614 = vrcp.pop %v1592
      %v1615 = vmul.f32 1.0, %v1614
      %v1616 = vrcp.pop %v1593
      %v1617 = vmul.f32 1.0, %v1616
      %v1618 = vrcp.pop %v1594
      %v1619 = vmul.f32 1.0, %v1618
      %v1620 = vrcp.pop %v1595
      %v1621 = vmul.f32 1.0, %v1620
      %v1622 = vrcp.pop %v1596
      %v1623 = vmul.f32 1.0, %v1622
      %v1624 = vrcp.pop %v1597
      %v1625 = vmul.f32 1.0, %v1624
      %v1626 = vrcp.pop %v1598
      %v1627 = vmul.f32 1.0, %v1626
      %v1628 = vrcp.pop %v1599
      %v1629 = vmul.f32 1.0, %v1628
      %v1630 = vrcp.pop %v1600
      %v1631 = vmul.f32 1.0, %v1630
      %v1632 = vrcp.pop %v1601
      %v1633 = vmul.f32 1.0, %v1632
      %v1634 = vmul.f32 %v1522, %v1603
      %v1635 = vmul.f32 %v1523, %v1605
      %v1636 = vmul.f32 %v1524, %v1607
      %v1637 = vmul.f32 %v1525, %v1609
      %v1638 = vmul.f32 %v1526, %v1611
      %v1639 = vmul.f32 %v1527, %v1613
      %v1640 = vmul.f32 %v1528, %v1615
      %v1641 = vmul.f32 %v1529, %v1617
      %v1642 = vmul.f32 %v1530, %v1619
      %v1643 = vmul.f32 %v1531, %v1621
      %v1644 = vmul.f32 %v1532, %v1623
      %v1645 = vmul.f32 %v1533, %v1625
      %v1646 = vmul.f32 %v1534, %v1627
      %v1647 = vmul.f32 %v1535, %v1629
      %v1648 = vmul.f32 %v1536, %v1631
      %v1649 = vmul.f32 %v1537, %v1633
      %s1650 = scalar_lea.vmem %s2, 64
      %v1651 = vld [vmem:[%s1650] sm:$0xff]
      %v1652 = vld [vmem:[%s1650 + $0x8] sm:$0xff]
      %v1653 = vld [vmem:[%s1650 + $0x10] sm:$0xff]
      %v1654 = vld [vmem:[%s1650 + $0x18] sm:$0xff]
      %1655 = vset.pattern.permute.xlu0 2
      %1656 = vperm.xlu0 %1655, %v1060
      %v1657 = vpop.permute.xlu0 %1656
      %1659 = vset.pattern.permute.xlu0 2
      %1660 = vperm.xlu0 %1659, %v1061
      %v1661 = vpop.permute.xlu0 %1660
      %1663 = vset.pattern.permute.xlu0 2
      %1664 = vperm.xlu0 %1663, %v1062
      %v1665 = vpop.permute.xlu0 %1664
      %1667 = vset.pattern.permute.xlu0 2
      %1668 = vperm.xlu0 %1667, %v1063
      %v1669 = vpop.permute.xlu0 %1668
      %v1672 = vsel %vm1073, %v1651, 0
      %v1675 = vsel %vm1073, %v1652, 0
      %v1678 = vsel %vm1073, %v1653, 0
      %v1681 = vsel %vm1073, %v1654, 0
      %1683 = vmatprep.subr.mxu0 %v1635
      %1684 = vmatpush1.msra.mxu0 %v1634
      %1685 = vmatprep.subr.mxu0 %v1639
      %1686 = vmatpush1.msra.mxu0 %v1638
      %1687 = vmatprep.subr.mxu0 %v1643
      %1688 = vmatpush1.msra.mxu0 %v1642
      %1689 = vmatprep.subr.mxu0 %v1647
      %1690 = vmatpush1.msra.mxu0 %v1646
      %1691 = vmatprep.subr.mxu0 0.0
      %1692 = vmatpush1.msra.mxu0 0.0
      %1693 = vmatprep.subr.mxu0 0.0
      %1694 = vmatpush1.msra.mxu0 0.0
      %1695 = vmatprep.subr.mxu0 0.0
      %1696 = vmatpush1.msra.mxu0 0.0
      %1697 = vmatprep.subr.mxu0 0.0
      %1698 = vmatpush1.msra.mxu0 0.0
      %1699 = vmatprep.subr.mxu0 0.0
      %1700 = vmatpush1.msra.mxu0 0.0
      %1701 = vmatprep.subr.mxu0 0.0
      %1702 = vmatpush1.msra.mxu0 0.0
      %1703 = vmatprep.subr.mxu0 0.0
      %1704 = vmatpush1.msra.mxu0 0.0
      %1705 = vmatprep.subr.mxu0 0.0
      %1706 = vmatpush1.msra.mxu0 0.0
      %1707 = vmatprep.subr.mxu0 0.0
      %1708 = vmatpush1.msra.mxu0 0.0
      %1709 = vmatprep.subr.mxu0 0.0
      %1710 = vmatpush1.msra.mxu0 0.0
      %1711 = vmatprep.subr.mxu0 0.0
      %1712 = vmatpush1.msra.mxu0 0.0
      %1713 = vmatprep.subr.mxu0 0.0
      %1714 = vmatpush1.msra.mxu0 0.0
      %1715 = vmatprep.subr.mxu0 0.0
      %1716 = vmatpush1.msra.mxu0 0.0
      %1717 = vmatprep.subr.mxu0 0.0
      %1718 = vmatpush1.msra.mxu0 0.0
      %1719 = vmatprep.subr.mxu0 0.0
      %1720 = vmatpush1.msra.mxu0 0.0
      %1721 = vmatprep.subr.mxu0 0.0
      %1722 = vmatpush1.msra.mxu0 0.0
      %1723 = vmatprep.subr.mxu0 0.0
      %1724 = vmatpush1.msra.mxu0 0.0
      %1725 = vmatprep.subr.mxu0 0.0
      %1726 = vmatpush1.msra.mxu0 0.0
      %1727 = vmatprep.subr.mxu0 0.0
      %1728 = vmatpush1.msra.mxu0 0.0
      %1729 = vmatprep.subr.mxu0 0.0
      %1730 = vmatpush1.msra.mxu0 0.0
      %1731 = vmatprep.subr.mxu0 0.0
      %1732 = vmatpush1.msra.mxu0 0.0
      %1733 = vmatprep.subr.mxu0 0.0
      %1734 = vmatpush1.msra.mxu0 0.0
      %1735 = vmatprep.subr.mxu0 0.0
      %1736 = vmatpush1.msra.mxu0 0.0
      %1737 = vmatprep.subr.mxu0 0.0
      %1738 = vmatpush1.msra.mxu0 0.0
      %1739 = vmatprep.subr.mxu0 0.0
      %1740 = vmatpush1.msra.mxu0 0.0
      %1741 = vmatprep.subr.mxu0 0.0
      %1742 = vmatpush1.msra.mxu0 0.0
      %1743 = vmatprep.subr.mxu0 0.0
      %1744 = vmatpush1.msra.mxu0 0.0
      %1745 = vmatprep.subr.mxu0 0.0
      %1746 = vmatpush1.msra.mxu0 0.0
      %1747 = vmatprep.mubr.f32.mxu0 0.0
      %1748 = vmatmul.mubr.f32.gmra.mrb[0].mxu0 %v1672
      %v1749 = vpop.f32.mrb[0].mxu0
      %v1750 = vadd.f32 %v1657, %v1749
      %v1751 = vpop.f32.mrb[0].mxu0
      %v1752 = vadd.f32 %v1657, %v1751
      %1753 = vmatprep.mubr.f32.mxu0 0.0
      %1754 = vmatmul.mubr.f32.gmra.mrb[0].mxu0 %v1675
      %v1755 = vpop.f32.mrb[0].mxu0
      %v1756 = vadd.f32 %v1661, %v1755
      %v1757 = vpop.f32.mrb[0].mxu0
      %v1758 = vadd.f32 %v1661, %v1757
      %1759 = vmatprep.mubr.f32.mxu0 0.0
      %1760 = vmatmul.mubr.f32.gmra.mrb[0].mxu0 %v1678
      %v1761 = vpop.f32.mrb[0].mxu0
      %v1762 = vadd.f32 %v1665, %v1761
      %v1763 = vpop.f32.mrb[0].mxu0
      %v1764 = vadd.f32 %v1665, %v1763
      %1765 = vmatprep.mubr.f32.mxu0 0.0
      %1766 = vmatmul.mubr.f32.gmra.mrb[0].mxu0 %v1681
      %v1767 = vpop.f32.mrb[0].mxu0
      %v1768 = vadd.f32 %v1669, %v1767
      %v1769 = vpop.f32.mrb[0].mxu0
      %v1770 = vadd.f32 %v1669, %v1769
      %1771 = vdwg.mxu0
      %1772 = vmatprep.subr.mxu0 %v1637
      %1773 = vmatpush1.msra.mxu0 %v1636
      %1774 = vmatprep.subr.mxu0 %v1641
      %1775 = vmatpush1.msra.mxu0 %v1640
      %1776 = vmatprep.subr.mxu0 %v1645
      %1777 = vmatpush1.msra.mxu0 %v1644
      %1778 = vmatprep.subr.mxu0 %v1649
      %1779 = vmatpush1.msra.mxu0 %v1648
      %1780 = vmatprep.subr.mxu0 0.0
      %1781 = vmatpush1.msra.mxu0 0.0
      %1782 = vmatprep.subr.mxu0 0.0
      %1783 = vmatpush1.msra.mxu0 0.0
      %1784 = vmatprep.subr.mxu0 0.0
      %1785 = vmatpush1.msra.mxu0 0.0
      %1786 = vmatprep.subr.mxu0 0.0
      %1787 = vmatpush1.msra.mxu0 0.0
      %1788 = vmatprep.subr.mxu0 0.0
      %1789 = vmatpush1.msra.mxu0 0.0
      %1790 = vmatprep.subr.mxu0 0.0
      %1791 = vmatpush1.msra.mxu0 0.0
      %1792 = vmatprep.subr.mxu0 0.0
      %1793 = vmatpush1.msra.mxu0 0.0
      %1794 = vmatprep.subr.mxu0 0.0
      %1795 = vmatpush1.msra.mxu0 0.0
      %1796 = vmatprep.subr.mxu0 0.0
      %1797 = vmatpush1.msra.mxu0 0.0
      %1798 = vmatprep.subr.mxu0 0.0
      %1799 = vmatpush1.msra.mxu0 0.0
      %1800 = vmatprep.subr.mxu0 0.0
      %1801 = vmatpush1.msra.mxu0 0.0
      %1802 = vmatprep.subr.mxu0 0.0
      %1803 = vmatpush1.msra.mxu0 0.0
      %1804 = vmatprep.subr.mxu0 0.0
      %1805 = vmatpush1.msra.mxu0 0.0
      %1806 = vmatprep.subr.mxu0 0.0
      %1807 = vmatpush1.msra.mxu0 0.0
      %1808 = vmatprep.subr.mxu0 0.0
      %1809 = vmatpush1.msra.mxu0 0.0
      %1810 = vmatprep.subr.mxu0 0.0
      %1811 = vmatpush1.msra.mxu0 0.0
      %1812 = vmatprep.subr.mxu0 0.0
      %1813 = vmatpush1.msra.mxu0 0.0
      %1814 = vmatprep.subr.mxu0 0.0
      %1815 = vmatpush1.msra.mxu0 0.0
      %1816 = vmatprep.subr.mxu0 0.0
      %1817 = vmatpush1.msra.mxu0 0.0
      %1818 = vmatprep.subr.mxu0 0.0
      %1819 = vmatpush1.msra.mxu0 0.0
      %1820 = vmatprep.subr.mxu0 0.0
      %1821 = vmatpush1.msra.mxu0 0.0
      %1822 = vmatprep.subr.mxu0 0.0
      %1823 = vmatpush1.msra.mxu0 0.0
      %1824 = vmatprep.subr.mxu0 0.0
      %1825 = vmatpush1.msra.mxu0 0.0
      %1826 = vmatprep.subr.mxu0 0.0
      %1827 = vmatpush1.msra.mxu0 0.0
      %1828 = vmatprep.subr.mxu0 0.0
      %1829 = vmatpush1.msra.mxu0 0.0
      %1830 = vmatprep.subr.mxu0 0.0
      %1831 = vmatpush1.msra.mxu0 0.0
      %1832 = vmatprep.subr.mxu0 0.0
      %1833 = vmatpush1.msra.mxu0 0.0
      %1834 = vmatprep.subr.mxu0 0.0
      %1835 = vmatpush1.msra.mxu0 0.0
      %1836 = vmatprep.mubr.f32.mxu0 0.0
      %1837 = vmatmul.mubr.f32.gmra.mrb[0].mxu0 %v1672
      %v1838 = vpop.f32.mrb[0].mxu0
      %v1839 = vadd.f32 %v1657, %v1838
      %v1840 = vpop.f32.mrb[0].mxu0
      %v1841 = vadd.f32 %v1657, %v1840
      %1842 = vmatprep.mubr.f32.mxu0 0.0
      %1843 = vmatmul.mubr.f32.gmra.mrb[0].mxu0 %v1675
      %v1844 = vpop.f32.mrb[0].mxu0
      %v1845 = vadd.f32 %v1661, %v1844
      %v1846 = vpop.f32.mrb[0].mxu0
      %v1847 = vadd.f32 %v1661, %v1846
      %1848 = vmatprep.mubr.f32.mxu0 0.0
      %1849 = vmatmul.mubr.f32.gmra.mrb[0].mxu0 %v1678
      %v1850 = vpop.f32.mrb[0].mxu0
      %v1851 = vadd.f32 %v1665, %v1850
      %v1852 = vpop.f32.mrb[0].mxu0
      %v1853 = vadd.f32 %v1665, %v1852
      %1854 = vmatprep.mubr.f32.mxu0 0.0
      %1855 = vmatmul.mubr.f32.gmra.mrb[0].mxu0 %v1681
      %v1856 = vpop.f32.mrb[0].mxu0
      %v1857 = vadd.f32 %v1669, %v1856
      %v1858 = vpop.f32.mrb[0].mxu0
      %v1859 = vadd.f32 %v1669, %v1858
      %1860 = vdwg.mxu0
      %v1861 = vxor.u32 %v1750, 2147483648
      %v1862 = vxor.u32 %v1752, 2147483648
      %v1863 = vxor.u32 %v1839, 2147483648
      %v1864 = vxor.u32 %v1841, 2147483648
      %v1865 = vxor.u32 %v1756, 2147483648
      %v1866 = vxor.u32 %v1758, 2147483648
      %v1867 = vxor.u32 %v1845, 2147483648
      %v1868 = vxor.u32 %v1847, 2147483648
      %v1869 = vxor.u32 %v1762, 2147483648
      %v1870 = vxor.u32 %v1764, 2147483648
      %v1871 = vxor.u32 %v1851, 2147483648
      %v1872 = vxor.u32 %v1853, 2147483648
      %v1873 = vxor.u32 %v1768, 2147483648
      %v1874 = vxor.u32 %v1770, 2147483648
      %v1875 = vxor.u32 %v1857, 2147483648
      %v1876 = vxor.u32 %v1859, 2147483648
      %v1877 = vmul.f32 %v1861, 1.442695
      %v1878 = vpow.pop %v1877
      %v1879 = vmul.f32 %v1862, 1.442695
      %v1880 = vpow.pop %v1879
      %v1881 = vmul.f32 %v1863, 1.442695
      %v1882 = vpow.pop %v1881
      %v1883 = vmul.f32 %v1864, 1.442695
      %v1884 = vpow.pop %v1883
      %v1885 = vmul.f32 %v1865, 1.442695
      %v1886 = vpow.pop %v1885
      %v1887 = vmul.f32 %v1866, 1.442695
      %v1888 = vpow.pop %v1887
      %v1889 = vmul.f32 %v1867, 1.442695
      %v1890 = vpow.pop %v1889
      %v1891 = vmul.f32 %v1868, 1.442695
      %v1892 = vpow.pop %v1891
      %v1893 = vmul.f32 %v1869, 1.442695
      %v1894 = vpow.pop %v1893
      %v1895 = vmul.f32 %v1870, 1.442695
      %v1896 = vpow.pop %v1895
      %v1897 = vmul.f32 %v1871, 1.442695
      %v1898 = vpow.pop %v1897
      %v1899 = vmul.f32 %v1872, 1.442695
      %v1900 = vpow.pop %v1899
      %v1901 = vmul.f32 %v1873, 1.442695
      %v1902 = vpow.pop %v1901
      %v1903 = vmul.f32 %v1874, 1.442695
      %v1904 = vpow.pop %v1903
      %v1905 = vmul.f32 %v1875, 1.442695
      %v1906 = vpow.pop %v1905
      %v1907 = vmul.f32 %v1876, 1.442695
      %v1908 = vpow.pop %v1907
      %v1909 = vadd.f32 %v1878, 1.0
      %v1910 = vadd.f32 %v1880, 1.0
      %v1911 = vadd.f32 %v1882, 1.0
      %v1912 = vadd.f32 %v1884, 1.0
      %v1913 = vadd.f32 %v1886, 1.0
      %v1914 = vadd.f32 %v1888, 1.0
      %v1915 = vadd.f32 %v1890, 1.0
      %v1916 = vadd.f32 %v1892, 1.0
      %v1917 = vadd.f32 %v1894, 1.0
      %v1918 = vadd.f32 %v1896, 1.0
      %v1919 = vadd.f32 %v1898, 1.0
      %v1920 = vadd.f32 %v1900, 1.0
      %v1921 = vadd.f32 %v1902, 1.0
      %v1922 = vadd.f32 %v1904, 1.0
      %v1923 = vadd.f32 %v1906, 1.0
      %v1924 = vadd.f32 %v1908, 1.0
      %v1925 = vrcp.pop %v1909
      %v1926 = vmul.f32 1.0, %v1925
      %v1927 = vrcp.pop %v1910
      %v1928 = vmul.f32 1.0, %v1927
      %v1929 = vrcp.pop %v1911
      %v1930 = vmul.f32 1.0, %v1929
      %v1931 = vrcp.pop %v1912
      %v1932 = vmul.f32 1.0, %v1931
      %v1933 = vrcp.pop %v1913
      %v1934 = vmul.f32 1.0, %v1933
      %v1935 = vrcp.pop %v1914
      %v1936 = vmul.f32 1.0, %v1935
      %v1937 = vrcp.pop %v1915
      %v1938 = vmul.f32 1.0, %v1937
      %v1939 = vrcp.pop %v1916
      %v1940 = vmul.f32 1.0, %v1939
      %v1941 = vrcp.pop %v1917
      %v1942 = vmul.f32 1.0, %v1941
      %v1943 = vrcp.pop %v1918
      %v1944 = vmul.f32 1.0, %v1943
      %v1945 = vrcp.pop %v1919
      %v1946 = vmul.f32 1.0, %v1945
      %v1947 = vrcp.pop %v1920
      %v1948 = vmul.f32 1.0, %v1947
      %v1949 = vrcp.pop %v1921
      %v1950 = vmul.f32 1.0, %v1949
      %v1951 = vrcp.pop %v1922
      %v1952 = vmul.f32 1.0, %v1951
      %v1953 = vrcp.pop %v1923
      %v1954 = vmul.f32 1.0, %v1953
      %v1955 = vrcp.pop %v1924
      %v1956 = vmul.f32 1.0, %v1955
      %v1957 = vmul.f32 %v1750, %v1926
      %v1958 = vmul.f32 %v1752, %v1928
      %v1959 = vmul.f32 %v1839, %v1930
      %v1960 = vmul.f32 %v1841, %v1932
      %v1961 = vmul.f32 %v1756, %v1934
      %v1962 = vmul.f32 %v1758, %v1936
      %v1963 = vmul.f32 %v1845, %v1938
      %v1964 = vmul.f32 %v1847, %v1940
      %v1965 = vmul.f32 %v1762, %v1942
      %v1966 = vmul.f32 %v1764, %v1944
      %v1967 = vmul.f32 %v1851, %v1946
      %v1968 = vmul.f32 %v1853, %v1948
      %v1969 = vmul.f32 %v1768, %v1950
      %v1970 = vmul.f32 %v1770, %v1952
      %v1971 = vmul.f32 %v1857, %v1954
      %v1972 = vmul.f32 %v1859, %v1956
      %s1973 = scalar_lea.vmem %s2, 96
      %v1974 = vld [vmem:[%s1973] sm:$0xff]
      %v1975 = vld [vmem:[%s1973 + $0x8] sm:$0xff]
      %v1976 = vld [vmem:[%s1973 + $0x10] sm:$0xff]
      %v1977 = vld [vmem:[%s1973 + $0x18] sm:$0xff]
      %1978 = vset.pattern.permute.xlu0 3
      %1979 = vperm.xlu0 %1978, %v1060
      %v1980 = vpop.permute.xlu0 %1979
      %1982 = vset.pattern.permute.xlu0 3
      %1983 = vperm.xlu0 %1982, %v1061
      %v1984 = vpop.permute.xlu0 %1983
      %1986 = vset.pattern.permute.xlu0 3
      %1987 = vperm.xlu0 %1986, %v1062
      %v1988 = vpop.permute.xlu0 %1987
      %1990 = vset.pattern.permute.xlu0 3
      %1991 = vperm.xlu0 %1990, %v1063
      %v1992 = vpop.permute.xlu0 %1991
      %v1995 = vsel %vm1073, %v1974, 0
      %v1998 = vsel %vm1073, %v1975, 0
      %v2001 = vsel %vm1073, %v1976, 0
      %v2004 = vsel %vm1073, %v1977, 0
      %2006 = vmatprep.subr.mxu0 %v1958
      %2007 = vmatpush1.msra.mxu0 %v1957
      %2008 = vmatprep.subr.mxu0 %v1962
      %2009 = vmatpush1.msra.mxu0 %v1961
      %2010 = vmatprep.subr.mxu0 %v1966
      %2011 = vmatpush1.msra.mxu0 %v1965
      %2012 = vmatprep.subr.mxu0 %v1970
      %2013 = vmatpush1.msra.mxu0 %v1969
      %2014 = vmatprep.subr.mxu0 0.0
      %2015 = vmatpush1.msra.mxu0 0.0
      %2016 = vmatprep.subr.mxu0 0.0
      %2017 = vmatpush1.msra.mxu0 0.0
      %2018 = vmatprep.subr.mxu0 0.0
      %2019 = vmatpush1.msra.mxu0 0.0
      %2020 = vmatprep.subr.mxu0 0.0
      %2021 = vmatpush1.msra.mxu0 0.0
      %2022 = vmatprep.subr.mxu0 0.0
      %2023 = vmatpush1.msra.mxu0 0.0
      %2024 = vmatprep.subr.mxu0 0.0
      %2025 = vmatpush1.msra.mxu0 0.0
      %2026 = vmatprep.subr.mxu0 0.0
      %2027 = vmatpush1.msra.mxu0 0.0
      %2028 = vmatprep.subr.mxu0 0.0
      %2029 = vmatpush1.msra.mxu0 0.0
      %2030 = vmatprep.subr.mxu0 0.0
      %2031 = vmatpush1.msra.mxu0 0.0
      %2032 = vmatprep.subr.mxu0 0.0
      %2033 = vmatpush1.msra.mxu0 0.0
      %2034 = vmatprep.subr.mxu0 0.0
      %2035 = vmatpush1.msra.mxu0 0.0
      %2036 = vmatprep.subr.mxu0 0.0
      %2037 = vmatpush1.msra.mxu0 0.0
      %2038 = vmatprep.subr.mxu0 0.0
      %2039 = vmatpush1.msra.mxu0 0.0
      %2040 = vmatprep.subr.mxu0 0.0
      %2041 = vmatpush1.msra.mxu0 0.0
      %2042 = vmatprep.subr.mxu0 0.0
      %2043 = vmatpush1.msra.mxu0 0.0
      %2044 = vmatprep.subr.mxu0 0.0
      %2045 = vmatpush1.msra.mxu0 0.0
      %2046 = vmatprep.subr.mxu0 0.0
      %2047 = vmatpush1.msra.mxu0 0.0
      %2048 = vmatprep.subr.mxu0 0.0
      %2049 = vmatpush1.msra.mxu0 0.0
      %2050 = vmatprep.subr.mxu0 0.0
      %2051 = vmatpush1.msra.mxu0 0.0
      %2052 = vmatprep.subr.mxu0 0.0
      %2053 = vmatpush1.msra.mxu0 0.0
      %2054 = vmatprep.subr.mxu0 0.0
      %2055 = vmatpush1.msra.mxu0 0.0
      %2056 = vmatprep.subr.mxu0 0.0
      %2057 = vmatpush1.msra.mxu0 0.0
      %2058 = vmatprep.subr.mxu0 0.0
      %2059 = vmatpush1.msra.mxu0 0.0
      %2060 = vmatprep.subr.mxu0 0.0
      %2061 = vmatpush1.msra.mxu0 0.0
      %2062 = vmatprep.subr.mxu0 0.0
      %2063 = vmatpush1.msra.mxu0 0.0
      %2064 = vmatprep.subr.mxu0 0.0
      %2065 = vmatpush1.msra.mxu0 0.0
      %2066 = vmatprep.subr.mxu0 0.0
      %2067 = vmatpush1.msra.mxu0 0.0
      %2068 = vmatprep.subr.mxu0 0.0
      %2069 = vmatpush1.msra.mxu0 0.0
      %2070 = vmatprep.mubr.f32.mxu0 0.0
      %2071 = vmatmul.mubr.f32.gmra.mrb[0].mxu0 %v1995
      %v2072 = vpop.f32.mrb[0].mxu0
      %v2073 = vadd.f32 %v1980, %v2072
      %v2074 = vpop.f32.mrb[0].mxu0
      %v2075 = vadd.f32 %v1980, %v2074
      %2076 = vmatprep.mubr.f32.mxu0 0.0
      %2077 = vmatmul.mubr.f32.gmra.mrb[0].mxu0 %v1998
      %v2078 = vpop.f32.mrb[0].mxu0
      %v2079 = vadd.f32 %v1984, %v2078
      %v2080 = vpop.f32.mrb[0].mxu0
      %v2081 = vadd.f32 %v1984, %v2080
      %2082 = vmatprep.mubr.f32.mxu0 0.0
      %2083 = vmatmul.mubr.f32.gmra.mrb[0].mxu0 %v2001
      %v2084 = vpop.f32.mrb[0].mxu0
      %v2085 = vadd.f32 %v1988, %v2084
      %v2086 = vpop.f32.mrb[0].mxu0
      %v2087 = vadd.f32 %v1988, %v2086
      %2088 = vmatprep.mubr.f32.mxu0 0.0
      %2089 = vmatmul.mubr.f32.gmra.mrb[0].mxu0 %v2004
      %v2090 = vpop.f32.mrb[0].mxu0
      %v2091 = vadd.f32 %v1992, %v2090
      %v2092 = vpop.f32.mrb[0].mxu0
      %v2093 = vadd.f32 %v1992, %v2092
      %2094 = vdwg.mxu0
      %2095 = vmatprep.subr.mxu0 %v1960
      %2096 = vmatpush1.msra.mxu0 %v1959
      %2097 = vmatprep.subr.mxu0 %v1964
      %2098 = vmatpush1.msra.mxu0 %v1963
      %2099 = vmatprep.subr.mxu0 %v1968
      %2100 = vmatpush1.msra.mxu0 %v1967
      %2101 = vmatprep.subr.mxu0 %v1972
      %2102 = vmatpush1.msra.mxu0 %v1971
      %2103 = vmatprep.subr.mxu0 0.0
      %2104 = vmatpush1.msra.mxu0 0.0
      %2105 = vmatprep.subr.mxu0 0.0
      %2106 = vmatpush1.msra.mxu0 0.0
      %2107 = vmatprep.subr.mxu0 0.0
      %2108 = vmatpush1.msra.mxu0 0.0
      %2109 = vmatprep.subr.mxu0 0.0
      %2110 = vmatpush1.msra.mxu0 0.0
      %2111 = vmatprep.subr.mxu0 0.0
      %2112 = vmatpush1.msra.mxu0 0.0
      %2113 = vmatprep.subr.mxu0 0.0
      %2114 = vmatpush1.msra.mxu0 0.0
      %2115 = vmatprep.subr.mxu0 0.0
      %2116 = vmatpush1.msra.mxu0 0.0
      %2117 = vmatprep.subr.mxu0 0.0
      %2118 = vmatpush1.msra.mxu0 0.0
      %2119 = vmatprep.subr.mxu0 0.0
      %2120 = vmatpush1.msra.mxu0 0.0
      %2121 = vmatprep.subr.mxu0 0.0
      %2122 = vmatpush1.msra.mxu0 0.0
      %2123 = vmatprep.subr.mxu0 0.0
      %2124 = vmatpush1.msra.mxu0 0.0
      %2125 = vmatprep.subr.mxu0 0.0
      %2126 = vmatpush1.msra.mxu0 0.0
      %2127 = vmatprep.subr.mxu0 0.0
      %2128 = vmatpush1.msra.mxu0 0.0
      %2129 = vmatprep.subr.mxu0 0.0
      %2130 = vmatpush1.msra.mxu0 0.0
      %2131 = vmatprep.subr.mxu0 0.0
      %2132 = vmatpush1.msra.mxu0 0.0
      %2133 = vmatprep.subr.mxu0 0.0
      %2134 = vmatpush1.msra.mxu0 0.0
      %2135 = vmatprep.subr.mxu0 0.0
      %2136 = vmatpush1.msra.mxu0 0.0
      %2137 = vmatprep.subr.mxu0 0.0
      %2138 = vmatpush1.msra.mxu0 0.0
      %2139 = vmatprep.subr.mxu0 0.0
      %2140 = vmatpush1.msra.mxu0 0.0
      %2141 = vmatprep.subr.mxu0 0.0
      %2142 = vmatpush1.msra.mxu0 0.0
      %2143 = vmatprep.subr.mxu0 0.0
      %2144 = vmatpush1.msra.mxu0 0.0
      %2145 = vmatprep.subr.mxu0 0.0
      %2146 = vmatpush1.msra.mxu0 0.0
      %2147 = vmatprep.subr.mxu0 0.0
      %2148 = vmatpush1.msra.mxu0 0.0
      %2149 = vmatprep.subr.mxu0 0.0
      %2150 = vmatpush1.msra.mxu0 0.0
      %2151 = vmatprep.subr.mxu0 0.0
      %2152 = vmatpush1.msra.mxu0 0.0
      %2153 = vmatprep.subr.mxu0 0.0
      %2154 = vmatpush1.msra.mxu0 0.0
      %2155 = vmatprep.subr.mxu0 0.0
      %2156 = vmatpush1.msra.mxu0 0.0
      %2157 = vmatprep.subr.mxu0 0.0
      %2158 = vmatpush1.msra.mxu0 0.0
      %2159 = vmatprep.mubr.f32.mxu0 0.0
      %2160 = vmatmul.mubr.f32.gmra.mrb[0].mxu0 %v1995
      %v2161 = vpop.f32.mrb[0].mxu0
      %v2162 = vadd.f32 %v1980, %v2161
      %v2163 = vpop.f32.mrb[0].mxu0
      %v2164 = vadd.f32 %v1980, %v2163
      %2165 = vmatprep.mubr.f32.mxu0 0.0
      %2166 = vmatmul.mubr.f32.gmra.mrb[0].mxu0 %v1998
      %v2167 = vpop.f32.mrb[0].mxu0
      %v2168 = vadd.f32 %v1984, %v2167
      %v2169 = vpop.f32.mrb[0].mxu0
      %v2170 = vadd.f32 %v1984, %v2169
      %2171 = vmatprep.mubr.f32.mxu0 0.0
      %2172 = vmatmul.mubr.f32.gmra.mrb[0].mxu0 %v2001
      %v2173 = vpop.f32.mrb[0].mxu0
      %v2174 = vadd.f32 %v1988, %v2173
      %v2175 = vpop.f32.mrb[0].mxu0
      %v2176 = vadd.f32 %v1988, %v2175
      %2177 = vmatprep.mubr.f32.mxu0 0.0
      %2178 = vmatmul.mubr.f32.gmra.mrb[0].mxu0 %v2004
      %v2179 = vpop.f32.mrb[0].mxu0
      %v2180 = vadd.f32 %v1992, %v2179
      %v2181 = vpop.f32.mrb[0].mxu0
      %v2182 = vadd.f32 %v1992, %v2181
      %2183 = vdwg.mxu0
      %v2184 = vxor.u32 %v2073, 2147483648
      %v2185 = vxor.u32 %v2075, 2147483648
      %v2186 = vxor.u32 %v2162, 2147483648
      %v2187 = vxor.u32 %v2164, 2147483648
      %v2188 = vxor.u32 %v2079, 2147483648
      %v2189 = vxor.u32 %v2081, 2147483648
      %v2190 = vxor.u32 %v2168, 2147483648
      %v2191 = vxor.u32 %v2170, 2147483648
      %v2192 = vxor.u32 %v2085, 2147483648
      %v2193 = vxor.u32 %v2087, 2147483648
      %v2194 = vxor.u32 %v2174, 2147483648
      %v2195 = vxor.u32 %v2176, 2147483648
      %v2196 = vxor.u32 %v2091, 2147483648
      %v2197 = vxor.u32 %v2093, 2147483648
      %v2198 = vxor.u32 %v2180, 2147483648
      %v2199 = vxor.u32 %v2182, 2147483648
      %v2200 = vmul.f32 %v2184, 1.442695
      %v2201 = vpow.pop %v2200
      %v2202 = vmul.f32 %v2185, 1.442695
      %v2203 = vpow.pop %v2202
      %v2204 = vmul.f32 %v2186, 1.442695
      %v2205 = vpow.pop %v2204
      %v2206 = vmul.f32 %v2187, 1.442695
      %v2207 = vpow.pop %v2206
      %v2208 = vmul.f32 %v2188, 1.442695
      %v2209 = vpow.pop %v2208
      %v2210 = vmul.f32 %v2189, 1.442695
      %v2211 = vpow.pop %v2210
      %v2212 = vmul.f32 %v2190, 1.442695
      %v2213 = vpow.pop %v2212
      %v2214 = vmul.f32 %v2191, 1.442695
      %v2215 = vpow.pop %v2214
      %v2216 = vmul.f32 %v2192, 1.442695
      %v2217 = vpow.pop %v2216
      %v2218 = vmul.f32 %v2193, 1.442695
      %v2219 = vpow.pop %v2218
      %v2220 = vmul.f32 %v2194, 1.442695
      %v2221 = vpow.pop %v2220
      %v2222 = vmul.f32 %v2195, 1.442695
      %v2223 = vpow.pop %v2222
      %v2224 = vmul.f32 %v2196, 1.442695
      %v2225 = vpow.pop %v2224
      %v2226 = vmul.f32 %v2197, 1.442695
      %v2227 = vpow.pop %v2226
      %v2228 = vmul.f32 %v2198, 1.442695
      %v2229 = vpow.pop %v2228
      %v2230 = vmul.f32 %v2199, 1.442695
      %v2231 = vpow.pop %v2230
      %v2232 = vadd.f32 %v2201, 1.0
      %v2233 = vadd.f32 %v2203, 1.0
      %v2234 = vadd.f32 %v2205, 1.0
      %v2235 = vadd.f32 %v2207, 1.0
      %v2236 = vadd.f32 %v2209, 1.0
      %v2237 = vadd.f32 %v2211, 1.0
      %v2238 = vadd.f32 %v2213, 1.0
      %v2239 = vadd.f32 %v2215, 1.0
      %v2240 = vadd.f32 %v2217, 1.0
      %v2241 = vadd.f32 %v2219, 1.0
      %v2242 = vadd.f32 %v2221, 1.0
      %v2243 = vadd.f32 %v2223, 1.0
      %v2244 = vadd.f32 %v2225, 1.0
      %v2245 = vadd.f32 %v2227, 1.0
      %v2246 = vadd.f32 %v2229, 1.0
      %v2247 = vadd.f32 %v2231, 1.0
      %v2248 = vrcp.pop %v2232
      %v2249 = vmul.f32 1.0, %v2248
      %v2250 = vrcp.pop %v2233
      %v2251 = vmul.f32 1.0, %v2250
      %v2252 = vrcp.pop %v2234
      %v2253 = vmul.f32 1.0, %v2252
      %v2254 = vrcp.pop %v2235
      %v2255 = vmul.f32 1.0, %v2254
      %v2256 = vrcp.pop %v2236
      %v2257 = vmul.f32 1.0, %v2256
      %v2258 = vrcp.pop %v2237
      %v2259 = vmul.f32 1.0, %v2258
      %v2260 = vrcp.pop %v2238
      %v2261 = vmul.f32 1.0, %v2260
      %v2262 = vrcp.pop %v2239
      %v2263 = vmul.f32 1.0, %v2262
      %v2264 = vrcp.pop %v2240
      %v2265 = vmul.f32 1.0, %v2264
      %v2266 = vrcp.pop %v2241
      %v2267 = vmul.f32 1.0, %v2266
      %v2268 = vrcp.pop %v2242
      %v2269 = vmul.f32 1.0, %v2268
      %v2270 = vrcp.pop %v2243
      %v2271 = vmul.f32 1.0, %v2270
      %v2272 = vrcp.pop %v2244
      %v2273 = vmul.f32 1.0, %v2272
      %v2274 = vrcp.pop %v2245
      %v2275 = vmul.f32 1.0, %v2274
      %v2276 = vrcp.pop %v2246
      %v2277 = vmul.f32 1.0, %v2276
      %v2278 = vrcp.pop %v2247
      %v2279 = vmul.f32 1.0, %v2278
      %v2280 = vmul.f32 %v2073, %v2249
      %v2281 = vmul.f32 %v2075, %v2251
      %v2282 = vmul.f32 %v2162, %v2253
      %v2283 = vmul.f32 %v2164, %v2255
      %v2284 = vmul.f32 %v2079, %v2257
      %v2285 = vmul.f32 %v2081, %v2259
      %v2286 = vmul.f32 %v2168, %v2261
      %v2287 = vmul.f32 %v2170, %v2263
      %v2288 = vmul.f32 %v2085, %v2265
      %v2289 = vmul.f32 %v2087, %v2267
      %v2290 = vmul.f32 %v2174, %v2269
      %v2291 = vmul.f32 %v2176, %v2271
      %v2292 = vmul.f32 %v2091, %v2273
      %v2293 = vmul.f32 %v2093, %v2275
      %v2294 = vmul.f32 %v2180, %v2277
      %v2295 = vmul.f32 %v2182, %v2279
      %2296 = vset.pattern.permute.xlu0 4
      %2297 = vperm.xlu0 %2296, %v1060
      %v2298 = vpop.permute.xlu0 %2297
      %2300 = vset.pattern.permute.xlu0 4
      %2301 = vperm.xlu0 %2300, %v1061
      %v2302 = vpop.permute.xlu0 %2301
      %2304 = vset.pattern.permute.xlu0 4
      %2305 = vperm.xlu0 %2304, %v1062
      %v2306 = vpop.permute.xlu0 %2305
      %2308 = vset.pattern.permute.xlu0 4
      %2309 = vperm.xlu0 %2308, %v1063
      %v2310 = vpop.permute.xlu0 %2309
      %v2312 = vmul.f32 %v2298, %v2280
      %v2313 = vmul.f32 %v2298, %v2281
      %v2314 = vmul.f32 %v2298, %v2282
      %v2315 = vmul.f32 %v2298, %v2283
      %v2316 = vmul.f32 %v2302, %v2284
      %v2317 = vmul.f32 %v2302, %v2285
      %v2318 = vmul.f32 %v2302, %v2286
      %v2319 = vmul.f32 %v2302, %v2287
      %v2320 = vmul.f32 %v2306, %v2288
      %v2321 = vmul.f32 %v2306, %v2289
      %v2322 = vmul.f32 %v2306, %v2290
      %v2323 = vmul.f32 %v2306, %v2291
      %v2324 = vmul.f32 %v2310, %v2292
      %v2325 = vmul.f32 %v2310, %v2293
      %v2326 = vmul.f32 %v2310, %v2294
      %v2327 = vmul.f32 %v2310, %v2295
      %v2328 = vadd.f32 %v2312, %v2316
      %v2329 = vadd.f32 %v2328, %v2320
      %v2330 = vadd.f32 %v2329, %v2324
      %v2331 = vrot.slane %v2330, 4
      %v2332 = vadd.f32 %v2330, %v2331
      %v2333 = vrot.slane %v2332, 2
      %v2334 = vadd.f32 %v2332, %v2333
      %v2335 = vrot.slane %v2334, 1
      %v2336 = vadd.f32 %v2334, %v2335
      %v2337 = vadd.f32 %v2313, %v2317
      %v2338 = vadd.f32 %v2337, %v2321
      %v2339 = vadd.f32 %v2338, %v2325
      %v2340 = vrot.slane %v2339, 4
      %v2341 = vadd.f32 %v2339, %v2340
      %v2342 = vrot.slane %v2341, 2
      %v2343 = vadd.f32 %v2341, %v2342
      %v2344 = vrot.slane %v2343, 1
      %v2345 = vadd.f32 %v2343, %v2344
      %v2346 = vadd.f32 %v2314, %v2318
      %v2347 = vadd.f32 %v2346, %v2322
      %v2348 = vadd.f32 %v2347, %v2326
      %v2349 = vrot.slane %v2348, 4
      %v2350 = vadd.f32 %v2348, %v2349
      %v2351 = vrot.slane %v2350, 2
      %v2352 = vadd.f32 %v2350, %v2351
      %v2353 = vrot.slane %v2352, 1
      %v2354 = vadd.f32 %v2352, %v2353
      %v2355 = vadd.f32 %v2315, %v2319
      %v2356 = vadd.f32 %v2355, %v2323
      %v2357 = vadd.f32 %v2356, %v2327
      %v2358 = vrot.slane %v2357, 4
      %v2359 = vadd.f32 %v2357, %v2358
      %v2360 = vrot.slane %v2359, 2
      %v2361 = vadd.f32 %v2359, %v2360
      %v2362 = vrot.slane %v2361, 1
      %v2363 = vadd.f32 %v2361, %v2362
      %2364 = vset.pattern.permute.xlu0 5
      %2365 = vperm.xlu0 %2364, %v1060
      %v2366 = vpop.permute.xlu0 %2365
      %v2368 = vadd.f32 %v2336, %v2366
      %v2369 = vadd.f32 %v2345, %v2366
      %v2370 = vadd.f32 %v2354, %v2366
      %v2371 = vadd.f32 %v2363, %v2366
      %v2372 = vtanh.pop %v2368
      %v2373 = vtanh.pop %v2369
      %v2374 = vtanh.pop %v2370
      %v2375 = vtanh.pop %v2371
      %v2376 = vmul.f32 %v2372, 10.0
      %v2377 = vmul.f32 %v2373, 10.0
      %v2378 = vmul.f32 %v2374, 10.0
      %v2379 = vmul.f32 %v2375, 10.0
      %v2380 = vlaneseq
      %v2381 = vshrl.u32 %v2380, 7
      %v2382 = vsub.s32 0, %v2381
      %v2383 = vrot.slane %v2376, %v2382
      %v2384 = vlaneseq
      %v2385 = vshrl.u32 %v2384, 7
      %v2386 = vsub.s32 0, %v2385
      %v2387 = vrot.slane %v2377, %v2386
      %v2388 = vlaneseq
      %v2389 = vshrl.u32 %v2388, 7
      %v2390 = vsub.s32 0, %v2389
      %v2391 = vrot.slane %v2378, %v2390
      %v2392 = vlaneseq
      %v2393 = vshrl.u32 %v2392, 7
      %v2394 = vsub.s32 0, %v2393
      %v2395 = vrot.slane %v2379, %v2394
      %v2396 = vmul.f32 %v1056, %v2383
      %v2397 = vmul.f32 %v1057, %v2387
      %v2398 = vmul.f32 %v1058, %v2391
      %v2399 = vmul.f32 %v1059, %v2395
      %v2400 = vpack.c.bf16 %v2396, %v2396
      %v2401 = vpack.c.bf16 %v2397, %v2397
      %v2402 = vpack.c.bf16 %v2398, %v2398
      %v2403 = vpack.c.bf16 %v2399, %v2399
      %v2404 = vld [vmem:[%s216] sm:$0xff]
      %2405 = vmatprep.subr.bf16.mxu0 %v452
      %2406 = vmatpush1.bf16.xpose.msra.mxu0 %v451
      %2407 = vmatprep.subr.bf16.mxu0 %v456
      %2408 = vmatpush1.bf16.xpose.msra.mxu0 %v455
      %2409 = vmatprep.subr.bf16.mxu0 %v460
      %2410 = vmatpush1.bf16.xpose.msra.mxu0 %v459
      %2411 = vmatprep.subr.bf16.mxu0 %v464
      %2412 = vmatpush1.bf16.xpose.msra.mxu0 %v463
      %2413 = vmatprep.subr.bf16.mxu0 %v468
      %2414 = vmatpush1.bf16.xpose.msra.mxu0 %v467
      %2415 = vmatprep.subr.bf16.mxu0 %v472
      %2416 = vmatpush1.bf16.xpose.msra.mxu0 %v471
      %2417 = vmatprep.subr.bf16.mxu0 %v476
      %2418 = vmatpush1.bf16.xpose.msra.mxu0 %v475
      %2419 = vmatprep.subr.bf16.mxu0 %v480
      %2420 = vmatpush1.bf16.xpose.msra.mxu0 %v479
      %2421 = vmatprep.subr.bf16.mxu0 0
      %2422 = vmatpush1.bf16.xpose.msra.mxu0 0
      %2423 = vmatprep.subr.bf16.mxu0 0
      %2424 = vmatpush1.bf16.xpose.msra.mxu0 0
      %2425 = vmatprep.subr.bf16.mxu0 0
      %2426 = vmatpush1.bf16.xpose.msra.mxu0 0
      %2427 = vmatprep.subr.bf16.mxu0 0
      %2428 = vmatpush1.bf16.xpose.msra.mxu0 0
      %2429 = vmatprep.subr.bf16.mxu0 0
      %2430 = vmatpush1.bf16.xpose.msra.mxu0 0
      %2431 = vmatprep.subr.bf16.mxu0 0
      %2432 = vmatpush1.bf16.xpose.msra.mxu0 0
      %2433 = vmatprep.subr.bf16.mxu0 0
      %2434 = vmatpush1.bf16.xpose.msra.mxu0 0
      %2435 = vmatprep.subr.bf16.mxu0 0
      %2436 = vmatpush1.bf16.xpose.msra.mxu0 0
      %2437 = vmatprep.mubr.bf16.mxu0 %v2401
      %2438 = vmatmul.mubr.bf16.gmra.mrb[0].mxu0 %v2400
      %v2439 = vpop.f32.mrb[0].mxu0
      %v2440 = vadd.f32 0.0, %v2439
      %v2441 = vpop.f32.mrb[0].mxu0
      %v2442 = vpop.f32.mrb[0].mxu0
      %v2443 = vpop.f32.mrb[0].mxu0
      %2444 = vdwg.mxu0
      %2445 = vmatprep.subr.bf16.mxu0 %v454
      %2446 = vmatpush1.bf16.xpose.msra.mxu0 %v453
      %2447 = vmatprep.subr.bf16.mxu0 %v458
      %2448 = vmatpush1.bf16.xpose.msra.mxu0 %v457
      %2449 = vmatprep.subr.bf16.mxu0 %v462
      %2450 = vmatpush1.bf16.xpose.msra.mxu0 %v461
      %2451 = vmatprep.subr.bf16.mxu0 %v466
      %2452 = vmatpush1.bf16.xpose.msra.mxu0 %v465
      %2453 = vmatprep.subr.bf16.mxu0 %v470
      %2454 = vmatpush1.bf16.xpose.msra.mxu0 %v469
      %2455 = vmatprep.subr.bf16.mxu0 %v474
      %2456 = vmatpush1.bf16.xpose.msra.mxu0 %v473
      %2457 = vmatprep.subr.bf16.mxu0 %v478
      %2458 = vmatpush1.bf16.xpose.msra.mxu0 %v477
      %2459 = vmatprep.subr.bf16.mxu0 %v482
      %2460 = vmatpush1.bf16.xpose.msra.mxu0 %v481
      %2461 = vmatprep.subr.bf16.mxu0 0
      %2462 = vmatpush1.bf16.xpose.msra.mxu0 0
      %2463 = vmatprep.subr.bf16.mxu0 0
      %2464 = vmatpush1.bf16.xpose.msra.mxu0 0
      %2465 = vmatprep.subr.bf16.mxu0 0
      %2466 = vmatpush1.bf16.xpose.msra.mxu0 0
      %2467 = vmatprep.subr.bf16.mxu0 0
      %2468 = vmatpush1.bf16.xpose.msra.mxu0 0
      %2469 = vmatprep.subr.bf16.mxu0 0
      %2470 = vmatpush1.bf16.xpose.msra.mxu0 0
      %2471 = vmatprep.subr.bf16.mxu0 0
      %2472 = vmatpush1.bf16.xpose.msra.mxu0 0
      %2473 = vmatprep.subr.bf16.mxu0 0
      %2474 = vmatpush1.bf16.xpose.msra.mxu0 0
      %2475 = vmatprep.subr.bf16.mxu0 0
      %2476 = vmatpush1.bf16.xpose.msra.mxu0 0
      %2477 = vmatprep.mubr.bf16.mxu0 %v2403
      %2478 = vmatmul.mubr.bf16.gmra.mrb[0].mxu0 %v2402
      %v2479 = vpop.f32.mrb[0].mxu0
      %v2480 = vadd.f32 %v2440, %v2479
      %v2481 = vpop.f32.mrb[0].mxu0
      %v2482 = vpop.f32.mrb[0].mxu0
      %v2483 = vpop.f32.mrb[0].mxu0
      %2484 = vdwg.mxu0
      %v2485 = vadd.f32 %v2404, %v2480
      %2486 = vst [vmem:[%s216] sm:$0xff] %v2485
      %p2487 = scmp.lt.s32.totalorder %s19, 1
      %s2488 = scalar_select %p2487, %s19, 1
      %s2489 = smul.addr %s2488, 8
      %s2490 = scalar_lea.vmem %s4, %s2489
      // Predicated region
      $region41: #{decoder_forward.1} parent=35 // pred_check
        %p2491 = pneg %p136
      $region42: #{decoder_forward.1} parent=35 // pred_check_branch
        %2493 = sbr.rel (%p2491) target = $region44
      $region43: #{decoder_forward.1} parent=35 // pred_region
        _
      $region44: #{decoder_forward.1} parent=35 // pred_fallthru
        _
    $region36: #{decoder_forward.1} parent=5 // pred_fallthru
      _
    %p2494 = scmp.le.s32.totalorder 2, %s10
    // Predicated region
    $region45: #{decoder_forward.1} parent=5 // pred_check
      %p2495 = pneg %p2494
    $region46: #{decoder_forward.1} parent=5 // pred_check_branch
      %2497 = sbr.rel (%p2495) target = $region48
    $region47: #{decoder_forward.1} parent=5 // pred_region
      %s2498 = ssub.s32 %s10, 2
      // Predicated region
      $region49: #{decoder_forward.1} parent=47 // pred_check
        %p2499 = pneg %p142
      $region50: #{decoder_forward.1} parent=47 // pred_check_branch
        %2501 = sbr.rel (%p2499) target = $region52
      $region51: #{decoder_forward.1} parent=47 // pred_region
        %p2502 = scmp.lt.s32.totalorder %s21, 1
        %s2503 = scalar_select %p2502, %s21, 1
        %s2504 = smul.addr %s2503, 8
        %s2505 = scalar_lea.vmem %s4, %s2504
      $region52: #{decoder_forward.1} parent=47 // pred_fallthru
        _
    $region48: #{decoder_forward.1} parent=5 // pred_fallthru
      _
  $region6: #{decoder_forward.1} parent=0 // loop_footer
    %s14 = sadd.s32 1, %s10
  $region7: #{decoder_forward.1} parent=0 // loop_footer_branch
    %9 = sbr.rel target = $region3
  $region8: #{decoder_forward.1} parent=0 // loop_exit
    _

</llo_original>
